<compile_context>
chip_gen: v7x
topology: tpu7x:2x2x1
jax: 0.10.0
libtpu: 0.0.40
codegen_flags: <defaults>
</compile_context>

<pallas_src>
import functools
from typing import NamedTuple, Optional

import jax
import jax.numpy as jnp
from jax.experimental import pallas as pl
from jax.experimental.pallas import tpu as pltpu


# -----------------------------------------------------------------------------
# Kernels
# -----------------------------------------------------------------------------
def _realnvp_kernel_fused(z_ref, w1_ref, b1_ref, w2_ref, b2_ref,
                          y_ref, logdet_ref, *, d):
    """Fused second layer: one (TB,H)x(H,2d) matmul.  Requires d % 128 == 0 so
    the [s | t] split of the MXU result is a lane-aligned vreg selection."""
    z = z_ref[...]                                    # (TB, 2d) f32
    z1 = z[:, :d]                                     # identity half
    z2 = z[:, d:]                                     # transformed half

    # Conditioner MLP.  MXU inputs may be bf16 (cast here on the VPU, hidden
    # under MXU/DMA work); accumulation is always f32.  tanh/exp run on the
    # EUP and the row-sum on the XLU — separate VLIW slots from the MXU.
    h = jnp.tanh(
        jnp.dot(z1.astype(w1_ref.dtype), w1_ref[...],
                preferred_element_type=jnp.float32) + b1_ref[...])   # (TB, H)

    st = (jnp.dot(h.astype(w2_ref.dtype), w2_ref[...],
                  preferred_element_type=jnp.float32)
          + b2_ref[...])                                             # (TB, 2d)
    s = jnp.tanh(st[:, :d])                           # log-scale
    t = st[:, d:]                                     # translation

    y2 = z2 * jnp.exp(s) + t
    # Full lane-dense (TB, D) output tile: identity half copied through in
    # registers — no wrapper-side concat / extra HBM pass.
    y_ref[...] = jnp.concatenate([z1, y2], axis=-1).astype(y_ref.dtype)
    logdet_ref[...] = jnp.sum(s, axis=-1, keepdims=True)


def _realnvp_kernel_split(z_ref, w1_ref, b1_ref, ws_ref, bs_ref, wt_ref, bt_ref,
                          y_ref, logdet_ref, *, d):
    """Two separate second-layer matmuls — used when d % 128 != 0 so we never
    slice an MXU result at a non-lane-aligned column."""
    z = z_ref[...]                                    # (TB, 2d) f32
    z1 = z[:, :d]
    z2 = z[:, d:]

    h = jnp.tanh(
        jnp.dot(z1.astype(w1_ref.dtype), w1_ref[...],
                preferred_element_type=jnp.float32) + b1_ref[...])   # (TB, H)
    hc = h.astype(ws_ref.dtype)
    s = jnp.tanh(jnp.dot(hc, ws_ref[...],
                         preferred_element_type=jnp.float32) + bs_ref[...])
    t = jnp.dot(hc, wt_ref[...],
                preferred_element_type=jnp.float32) + bt_ref[...]

    y2 = z2 * jnp.exp(s) + t
    y_ref[...] = jnp.concatenate([z1, y2], axis=-1).astype(y_ref.dtype)
    logdet_ref[...] = jnp.sum(s, axis=-1, keepdims=True)


# -----------------------------------------------------------------------------
# One-time weight preparation (NOT per call)
# -----------------------------------------------------------------------------
class PreparedParams(NamedTuple):
    fused: bool
    w1: jax.Array                 # (d, H)   MXU dtype
    b1: jax.Array                 # (1, H)   f32
    w2: jax.Array                 # (H, 2d) if fused else Ws (H, d), MXU dtype
    b2: jax.Array                 # (1, 2d) if fused else bs (1, d), f32
    wt: Optional[jax.Array]       # (H, d) when not fused
    bt: Optional[jax.Array]       # (1, d) when not fused


def prepare_params(params, *, compute_dtype=jnp.float32):
    """Fuse [Ws|Wt] (when lane-aligned) and cast weights to the MXU dtype.

    Call once at init / after each optimizer step — not inside the hot
    forward — so the per-call path never re-reads/re-writes the weights in
    separate XLA passes."""
    w1, b1, ws, bs, wt, bt = params
    d, _hidden = w1.shape
    fused = (d % 128 == 0)                 # lane-aligned [s | t] split
    w1_c = w1.astype(compute_dtype)
    b1_f = b1.astype(jnp.float32)
    if fused:
        return PreparedParams(
            True, w1_c, b1_f,
            jnp.concatenate([ws, wt], axis=-1).astype(compute_dtype),
            jnp.concatenate([bs, bt], axis=-1).astype(jnp.float32),
            None, None)
    return PreparedParams(
        False, w1_c, b1_f,
        ws.astype(compute_dtype), bs.astype(jnp.float32),
        wt.astype(compute_dtype), bt.astype(jnp.float32))


# -----------------------------------------------------------------------------
# Wrapper
# -----------------------------------------------------------------------------
def _round_up(x, m):
    return ((x + m - 1) // m) * m


def _default_vmem_limit_bytes():
    # Larger scoped VMEM pays off on 128-MiB parts (v5e/v6e: bigger batch
    # tiles, deeper buffering); stays conservative on 64-MiB parts (v7x).
    try:
        cap = int(pltpu.get_tpu_info().vmem_capacity_bytes)
        return max(32 * 1024 * 1024, min(cap // 2, 96 * 1024 * 1024))
    except Exception:  # noqa: BLE001 — any failure: fall back to a safe value
        return 32 * 1024 * 1024


def _pick_tb(B, cap):
    """Batch tile: multiple of 8, divides B when reasonably possible (no
    masked partial block), and gives >= 2 grid steps so v7x's two TensorCores
    can shard the batch axis and the DMA/compute pipeline has work to overlap."""
    if B < 16 or B % 8 != 0:
        return min(B, cap)
    best = 0
    limit = min(cap, B // 2)
    t = 8
    while t <= limit:
        if B % t == 0:
            best = t
        t += 8
    if best * 4 >= limit:              # a reasonably large exact divisor
        return best
    # No good divisor: take a big tile and accept one masked partial block.
    return min(cap, _round_up(max(B // 2, 8), 8))


def realnvp_forward(z, prepared, *, tb=None, vmem_limit_bytes=None):
    """RealNVP affine-coupling forward.

    z: (B, D) float32 with D even.  prepared: PreparedParams.
    Returns (y, logdet) with y: (B, D) in z.dtype, logdet: (B, 1) f32.
    """
    B, D = z.shape
    assert D % 2 == 0, "RealNVP coupling requires an even feature dimension"
    d = D // 2
    H = prepared.w1.shape[-1]
    assert prepared.w1.shape[0] == d

    if vmem_limit_bytes is None:
        vmem_limit_bytes = _default_vmem_limit_bytes()
    tb_cap = 1024 if vmem_limit_bytes >= 64 * 1024 * 1024 else 512
    if tb is None:
        tb = _pick_tb(B, tb_cap)
    grid = (pl.cdiv(B, tb),)

    if prepared.fused:
        kernel = functools.partial(_realnvp_kernel_fused, d=d)
        weights = (prepared.w1, prepared.b1, prepared.w2, prepared.b2)
        weight_shapes = ((d, H), (1, H), (H, 2 * d), (1, 2 * d))
    else:
        kernel = functools.partial(_realnvp_kernel_split, d=d)
        weights = (prepared.w1, prepared.b1, prepared.w2, prepared.b2,
                   prepared.wt, prepared.bt)
        weight_shapes = ((d, H), (1, H), (H, d), (1, d), (H, d), (1, d))

    weight_bytes = sum(int(w.size) * w.dtype.itemsize for w in weights)
    cost = pl.CostEstimate(
        flops=6 * B * d * H + 4 * B * d,
        transcendentals=B * (H + 2 * d),
        bytes_accessed=(2 * B * D + B) * 4 + weight_bytes,
    )

    def _call(weight_pipeline_mode):
        def resident(shape):
            # Weights/biases stay VMEM-resident for the whole grid (constant
            # index_map); single-buffer them when the API allows.
            if weight_pipeline_mode is None:
                return pl.BlockSpec(shape, lambda i: (0, 0))
            return pl.BlockSpec(shape, lambda i: (0, 0),
                                pipeline_mode=weight_pipeline_mode)

        in_specs = [pl.BlockSpec((tb, D), lambda i: (i, 0))]   # full z tile
        in_specs += [resident(s) for s in weight_shapes]

        return pl.pallas_call(
            kernel,
            out_shape=(jax.ShapeDtypeStruct((B, D), z.dtype),
                       jax.ShapeDtypeStruct((B, 1), jnp.float32)),
            grid=grid,
            in_specs=in_specs,
            out_specs=(pl.BlockSpec((tb, D), lambda i: (i, 0)),   # full y tile
                       pl.BlockSpec((tb, 1), lambda i: (i, 0))),  # logdet
            compiler_params=pltpu.CompilerParams(
                dimension_semantics=("parallel",),
                vmem_limit_bytes=vmem_limit_bytes,
            ),
            cost_estimate=cost,
        )(z, *weights)

    try:
        return _call(pl.Buffered(1))
    except Exception:  # noqa: BLE001 — stricter lowerings may reject
        # single-buffered resident operands; fall back to default buffering.
        return _call(None)


# -----------------------------------------------------------------------------
# Params / reference
# -----------------------------------------------------------------------------
def init_params(key, dim_num, hidden):
    d = dim_num // 2
    k1, k2, k3 = jax.random.split(key, 3)
    scale = 0.1
    w1 = scale * jax.random.normal(k1, (d, hidden), jnp.float32)
    b1 = jnp.zeros((1, hidden), jnp.float32)
    ws = scale * jax.random.normal(k2, (hidden, d), jnp.float32)
    bs = jnp.zeros((1, d), jnp.float32)
    wt = scale * jax.random.normal(k3, (hidden, d), jnp.float32)
    bt = jnp.zeros((1, d), jnp.float32)
    return w1, b1, ws, bs, wt, bt


def realnvp_reference(z, params):
    w1, b1, ws, bs, wt, bt = params
    d = z.shape[-1] // 2
    z1, z2 = z[:, :d], z[:, d:]
    h = jnp.tanh(z1 @ w1 + b1)
    s = jnp.tanh(h @ ws + bs)
    t = h @ wt + bt
    y = jnp.concatenate([z1, z2 * jnp.exp(s) + t], axis=-1)
    return y, jnp.sum(s, axis=-1, keepdims=True)


if __name__ == "__main__":
    key = jax.random.PRNGKey(0)
    kz1, kp1, kz2, kp2 = jax.random.split(key, 4)

    # ---- case 1: d % 128 != 0 -> split second-layer kernel, 2-step grid -----
    B, dim_num, hidden = 32, 16, 32
    z = jax.random.normal(kz1, (B, dim_num), jnp.float32)
    params = init_params(kp1, dim_num, hidden)
    y_ref, ld_ref = realnvp_reference(z, params)

    # f32 MXU path — strict correctness check.
    prep_f32 = prepare_params(params, compute_dtype=jnp.float32)
    y, ld = realnvp_forward(z, prep_f32)
    jax.block_until_ready((y, ld))
    assert y.shape == (B, dim_num) and ld.shape == (B, 1)
    assert jnp.allclose(y, y_ref, atol=1e-5, rtol=1e-5)
    assert jnp.allclose(ld, ld_ref, atol=1e-5, rtol=1e-5)

    # bf16 MXU path (f32 accumulation, in-kernel activation cast).
    prep_bf16 = prepare_params(params, compute_dtype=jnp.bfloat16)
    y_bf, ld_bf = realnvp_forward(z, prep_bf16)
    jax.block_until_ready((y_bf, ld_bf))
    assert jnp.allclose(y_bf, y_ref, atol=5e-2, rtol=5e-2)
    assert jnp.allclose(ld_bf, ld_ref, atol=5e-2, rtol=5e-2)

    # ---- case 2: d % 128 == 0 -> fused lane-aligned (H, 2d) second layer ----
    B2, dim_num2, hidden2 = 16, 256, 128
    z_fused = jax.random.normal(kz2, (B2, dim_num2), jnp.float32)
    params_fused = init_params(kp2, dim_num2, hidden2)
    yf_ref, ldf_ref = realnvp_reference(z_fused, params_fused)
    prep_fused = prepare_params(params_fused, compute_dtype=jnp.float32)
    yf, ldf = realnvp_forward(z_fused, prep_fused)
    jax.block_until_ready((yf, ldf))
    assert yf.shape == (B2, dim_num2) and ldf.shape == (B2, 1)
    # Looser tolerance: at K=128 the XLA reference and the in-kernel MXU path
    # may use slightly different default matmul precisions.
    assert jnp.allclose(yf, yf_ref, atol=2e-2, rtol=2e-2)
    assert jnp.allclose(ldf, ldf_ref, atol=2e-2, rtol=2e-2)

    print("KERNEL_OK")
</pallas_src>

<mosaic_0001>
module attributes {stable_mosaic.version = 11 : i64} {
  func.func @_realnvp_kernel_split(%arg0: i32, %arg1: memref<16x16xf32, #tpu.memory_space<vmem>>, %arg2: memref<8x32xf32, #tpu.memory_space<vmem>>, %arg3: memref<1x32xf32, #tpu.memory_space<vmem>>, %arg4: memref<32x8xf32, #tpu.memory_space<vmem>>, %arg5: memref<1x8xf32, #tpu.memory_space<vmem>>, %arg6: memref<32x8xf32, #tpu.memory_space<vmem>>, %arg7: memref<1x8xf32, #tpu.memory_space<vmem>>, %arg8: memref<16x16xf32, #tpu.memory_space<vmem>>, %arg9: memref<16x1xf32, #tpu.memory_space<vmem>>) attributes {dimension_semantics = [#tpu.dimension_semantics<parallel>], iteration_bounds = array<i64: 2>, scalar_prefetch = 0 : i64, scratch_operands = 0 : i64, tpu.core_type = #tpu.core_type<tc>, window_params = [{transform_indices = @transform_0, window_bounds = array<i64: 16, 16>}, {pipeline_mode = #tpu.pipeline_mode<synchronous>, transform_indices = @transform_1, window_bounds = array<i64: 8, 32>}, {pipeline_mode = #tpu.pipeline_mode<synchronous>, transform_indices = @transform_2, window_bounds = array<i64: 1, 32>}, {pipeline_mode = #tpu.pipeline_mode<synchronous>, transform_indices = @transform_3, window_bounds = array<i64: 32, 8>}, {pipeline_mode = #tpu.pipeline_mode<synchronous>, transform_indices = @transform_4, window_bounds = array<i64: 1, 8>}, {pipeline_mode = #tpu.pipeline_mode<synchronous>, transform_indices = @transform_5, window_bounds = array<i64: 32, 8>}, {pipeline_mode = #tpu.pipeline_mode<synchronous>, transform_indices = @transform_6, window_bounds = array<i64: 1, 8>}, {transform_indices = @transform_7, window_bounds = array<i64: 16, 16>}, {transform_indices = @transform_8, window_bounds = array<i64: 16, 1>}]} {
    %c0 = arith.constant 0 : index
    %c0_0 = arith.constant 0 : index
    %0 = vector.load %arg1[%c0, %c0_0] : memref<16x16xf32, #tpu.memory_space<vmem>>, vector<16x16xf32>
    %1 = vector.extract_strided_slice %0 {offsets = [0, 0], sizes = [16, 8], strides = [1, 1]} : vector<16x16xf32> to vector<16x8xf32>
    %2 = vector.extract_strided_slice %0 {offsets = [0, 8], sizes = [16, 8], strides = [1, 1]} : vector<16x16xf32> to vector<16x8xf32>
    %c0_1 = arith.constant 0 : index
    %c0_2 = arith.constant 0 : index
    %3 = vector.load %arg2[%c0_1, %c0_2] : memref<8x32xf32, #tpu.memory_space<vmem>>, vector<8x32xf32>
    %cst = arith.constant dense<0.000000e+00> : vector<16x32xf32>
    %4 = tpu.matmul %1, %3, %cst {dimension_numbers = #tpu.dot_dimension_numbers<[1], [0], [0], [1], [0, 0, 1, 1], [], []>} : vector<16x8xf32>, vector<8x32xf32>, vector<16x32xf32> -> vector<16x32xf32>
    %c0_3 = arith.constant 0 : index
    %c0_4 = arith.constant 0 : index
    %5 = vector.load %arg3[%c0_3, %c0_4] : memref<1x32xf32, #tpu.memory_space<vmem>>, vector<1x32xf32>
    %6 = vector.broadcast %5 : vector<1x32xf32> to vector<16x32xf32>
    %7 = arith.addf %4, %6 : vector<16x32xf32>
    %8 = math.tanh %7 : vector<16x32xf32>
    %c0_5 = arith.constant 0 : index
    %c0_6 = arith.constant 0 : index
    %9 = vector.load %arg4[%c0_5, %c0_6] : memref<32x8xf32, #tpu.memory_space<vmem>>, vector<32x8xf32>
    %cst_7 = arith.constant dense<0.000000e+00> : vector<16x8xf32>
    %10 = tpu.matmul %8, %9, %cst_7 {dimension_numbers = #tpu.dot_dimension_numbers<[1], [0], [0], [1], [0, 0, 1, 1], [], []>} : vector<16x32xf32>, vector<32x8xf32>, vector<16x8xf32> -> vector<16x8xf32>
    %c0_8 = arith.constant 0 : index
    %c0_9 = arith.constant 0 : index
    %11 = vector.load %arg5[%c0_8, %c0_9] : memref<1x8xf32, #tpu.memory_space<vmem>>, vector<1x8xf32>
    %12 = vector.broadcast %11 : vector<1x8xf32> to vector<16x8xf32>
    %13 = arith.addf %10, %12 : vector<16x8xf32>
    %14 = math.tanh %13 : vector<16x8xf32>
    %c0_10 = arith.constant 0 : index
    %c0_11 = arith.constant 0 : index
    %15 = vector.load %arg6[%c0_10, %c0_11] : memref<32x8xf32, #tpu.memory_space<vmem>>, vector<32x8xf32>
    %cst_12 = arith.constant dense<0.000000e+00> : vector<16x8xf32>
    %16 = tpu.matmul %8, %15, %cst_12 {dimension_numbers = #tpu.dot_dimension_numbers<[1], [0], [0], [1], [0, 0, 1, 1], [], []>} : vector<16x32xf32>, vector<32x8xf32>, vector<16x8xf32> -> vector<16x8xf32>
    %c0_13 = arith.constant 0 : index
    %c0_14 = arith.constant 0 : index
    %17 = vector.load %arg7[%c0_13, %c0_14] : memref<1x8xf32, #tpu.memory_space<vmem>>, vector<1x8xf32>
    %18 = vector.broadcast %17 : vector<1x8xf32> to vector<16x8xf32>
    %19 = arith.addf %16, %18 : vector<16x8xf32>
    %20 = math.exp %14 : vector<16x8xf32>
    %21 = arith.mulf %2, %20 : vector<16x8xf32>
    %22 = arith.addf %21, %19 : vector<16x8xf32>
    %23 = tpu.concatenate %1, %22 in 1 : vector<16x8xf32>, vector<16x8xf32> -> vector<16x16xf32>
    %c0_15 = arith.constant 0 : index
    %c0_16 = arith.constant 0 : index
    %24 = vector.load %arg8[%c0_15, %c0_16] : memref<16x16xf32, #tpu.memory_space<vmem>>, vector<16x16xf32>
    tpu.vector_store %arg8[%c0_15, %c0_16], %23 {strides = array<i32>} : memref<16x16xf32, #tpu.memory_space<vmem>>, vector<16x16xf32>,
    %cst_17 = arith.constant dense<0.000000e+00> : vector<16xf32>
    %25 = vector.multi_reduction <add>, %14, %cst_17 [1] : vector<16x8xf32> to vector<16xf32>
    %26 = vector.shape_cast %25 : vector<16xf32> to vector<16x1xf32>
    %c0_18 = arith.constant 0 : index
    %c0_19 = arith.constant 0 : index
    %27 = vector.load %arg9[%c0_18, %c0_19] : memref<16x1xf32, #tpu.memory_space<vmem>>, vector<16x1xf32>
    tpu.vector_store %arg9[%c0_18, %c0_19], %26 {strides = array<i32>} : memref<16x1xf32, #tpu.memory_space<vmem>>, vector<16x1xf32>,
    return
  }
  func.func @transform_0(%arg0: i32) -> (i32, i32) {
    %c0_i32 = arith.constant 0 : i32
    %c0_i32_0 = arith.constant 0 : i32
    return %arg0, %c0_i32 : i32, i32
  }
  func.func @transform_1(%arg0: i32) -> (i32, i32) {
    %c0_i32 = arith.constant 0 : i32
    %c0_i32_0 = arith.constant 0 : i32
    %c0_i32_1 = arith.constant 0 : i32
    return %c0_i32, %c0_i32_0 : i32, i32
  }
  func.func @transform_2(%arg0: i32) -> (i32, i32) {
    %c0_i32 = arith.constant 0 : i32
    %c0_i32_0 = arith.constant 0 : i32
    %c0_i32_1 = arith.constant 0 : i32
    return %c0_i32, %c0_i32_0 : i32, i32
  }
  func.func @transform_3(%arg0: i32) -> (i32, i32) {
    %c0_i32 = arith.constant 0 : i32
    %c0_i32_0 = arith.constant 0 : i32
    %c0_i32_1 = arith.constant 0 : i32
    return %c0_i32, %c0_i32_0 : i32, i32
  }
  func.func @transform_4(%arg0: i32) -> (i32, i32) {
    %c0_i32 = arith.constant 0 : i32
    %c0_i32_0 = arith.constant 0 : i32
    %c0_i32_1 = arith.constant 0 : i32
    return %c0_i32, %c0_i32_0 : i32, i32
  }
  func.func @transform_5(%arg0: i32) -> (i32, i32) {
    %c0_i32 = arith.constant 0 : i32
    %c0_i32_0 = arith.constant 0 : i32
    %c0_i32_1 = arith.constant 0 : i32
    return %c0_i32, %c0_i32_0 : i32, i32
  }
  func.func @transform_6(%arg0: i32) -> (i32, i32) {
    %c0_i32 = arith.constant 0 : i32
    %c0_i32_0 = arith.constant 0 : i32
    %c0_i32_1 = arith.constant 0 : i32
    return %c0_i32, %c0_i32_0 : i32, i32
  }
  func.func @transform_7(%arg0: i32) -> (i32, i32) {
    %c0_i32 = arith.constant 0 : i32
    %c0_i32_0 = arith.constant 0 : i32
    return %arg0, %c0_i32 : i32, i32
  }
  func.func @transform_8(%arg0: i32) -> (i32, i32) {
    %c0_i32 = arith.constant 0 : i32
    %c0_i32_0 = arith.constant 0 : i32
    return %arg0, %c0_i32 : i32, i32
  }
}

module attributes {stable_mosaic.version = 11 : i64} {
  func.func @_realnvp_kernel_split(%arg0: i32, %arg1: memref<16x16xf32, #tpu.memory_space<vmem>>, %arg2: memref<8x32xf32, #tpu.memory_space<vmem>>, %arg3: memref<1x32xf32, #tpu.memory_space<vmem>>, %arg4: memref<32x8xf32, #tpu.memory_space<vmem>>, %arg5: memref<1x8xf32, #tpu.memory_space<vmem>>, %arg6: memref<32x8xf32, #tpu.memory_space<vmem>>, %arg7: memref<1x8xf32, #tpu.memory_space<vmem>>, %arg8: memref<16x16xf32, #tpu.memory_space<vmem>>, %arg9: memref<16x1xf32, #tpu.memory_space<vmem>>) attributes {dimension_semantics = [#tpu.dimension_semantics<parallel>], iteration_bounds = array<i64: 2>, scalar_prefetch = 0 : i64, scratch_operands = 0 : i64, tpu.core_type = #tpu.core_type<tc>, window_params = [{transform_indices = @transform_0, window_bounds = array<i64: 16, 16>}, {pipeline_mode = #tpu.pipeline_mode<synchronous>, transform_indices = @transform_1, window_bounds = array<i64: 8, 32>}, {pipeline_mode = #tpu.pipeline_mode<synchronous>, transform_indices = @transform_2, window_bounds = array<i64: 1, 32>}, {pipeline_mode = #tpu.pipeline_mode<synchronous>, transform_indices = @transform_3, window_bounds = array<i64: 32, 8>}, {pipeline_mode = #tpu.pipeline_mode<synchronous>, transform_indices = @transform_4, window_bounds = array<i64: 1, 8>}, {pipeline_mode = #tpu.pipeline_mode<synchronous>, transform_indices = @transform_5, window_bounds = array<i64: 32, 8>}, {pipeline_mode = #tpu.pipeline_mode<synchronous>, transform_indices = @transform_6, window_bounds = array<i64: 1, 8>}, {transform_indices = @transform_7, window_bounds = array<i64: 16, 16>}, {transform_indices = @transform_8, window_bounds = array<i64: 16, 1>}]} {
    %c0 = arith.constant 0 : index
    %c0_0 = arith.constant 0 : index
    %0 = vector.load %arg1[%c0, %c0_0] : memref<16x16xf32, #tpu.memory_space<vmem>>, vector<16x16xf32>
    %1 = vector.extract_strided_slice %0 {offsets = [0, 0], sizes = [16, 8], strides = [1, 1]} : vector<16x16xf32> to vector<16x8xf32>
    %2 = vector.extract_strided_slice %0 {offsets = [0, 8], sizes = [16, 8], strides = [1, 1]} : vector<16x16xf32> to vector<16x8xf32>
    %c0_1 = arith.constant 0 : index
    %c0_2 = arith.constant 0 : index
    %3 = vector.load %arg2[%c0_1, %c0_2] : memref<8x32xf32, #tpu.memory_space<vmem>>, vector<8x32xf32>
    %cst = arith.constant dense<0.000000e+00> : vector<16x32xf32>
    %4 = tpu.matmul %1, %3, %cst {dimension_numbers = #tpu.dot_dimension_numbers<[1], [0], [0], [1], [0, 0, 1, 1], [], []>} : vector<16x8xf32>, vector<8x32xf32>, vector<16x32xf32> -> vector<16x32xf32>
    %c0_3 = arith.constant 0 : index
    %c0_4 = arith.constant 0 : index
    %5 = vector.load %arg3[%c0_3, %c0_4] : memref<1x32xf32, #tpu.memory_space<vmem>>, vector<1x32xf32>
    %6 = vector.broadcast %5 : vector<1x32xf32> to vector<16x32xf32>
    %7 = arith.addf %4, %6 : vector<16x32xf32>
    %8 = math.tanh %7 : vector<16x32xf32>
    %c0_5 = arith.constant 0 : index
    %c0_6 = arith.constant 0 : index
    %9 = vector.load %arg4[%c0_5, %c0_6] : memref<32x8xf32, #tpu.memory_space<vmem>>, vector<32x8xf32>
    %cst_7 = arith.constant dense<0.000000e+00> : vector<16x8xf32>
    %10 = tpu.matmul %8, %9, %cst_7 {dimension_numbers = #tpu.dot_dimension_numbers<[1], [0], [0], [1], [0, 0, 1, 1], [], []>} : vector<16x32xf32>, vector<32x8xf32>, vector<16x8xf32> -> vector<16x8xf32>
    %c0_8 = arith.constant 0 : index
    %c0_9 = arith.constant 0 : index
    %11 = vector.load %arg5[%c0_8, %c0_9] : memref<1x8xf32, #tpu.memory_space<vmem>>, vector<1x8xf32>
    %12 = vector.broadcast %11 : vector<1x8xf32> to vector<16x8xf32>
    %13 = arith.addf %10, %12 : vector<16x8xf32>
    %14 = math.tanh %13 : vector<16x8xf32>
    %c0_10 = arith.constant 0 : index
    %c0_11 = arith.constant 0 : index
    %15 = vector.load %arg6[%c0_10, %c0_11] : memref<32x8xf32, #tpu.memory_space<vmem>>, vector<32x8xf32>
    %cst_12 = arith.constant dense<0.000000e+00> : vector<16x8xf32>
    %16 = tpu.matmul %8, %15, %cst_12 {dimension_numbers = #tpu.dot_dimension_numbers<[1], [0], [0], [1], [0, 0, 1, 1], [], []>} : vector<16x32xf32>, vector<32x8xf32>, vector<16x8xf32> -> vector<16x8xf32>
    %c0_13 = arith.constant 0 : index
    %c0_14 = arith.constant 0 : index
    %17 = vector.load %arg7[%c0_13, %c0_14] : memref<1x8xf32, #tpu.memory_space<vmem>>, vector<1x8xf32>
    %18 = vector.broadcast %17 : vector<1x8xf32> to vector<16x8xf32>
    %19 = arith.addf %16, %18 : vector<16x8xf32>
    %20 = math.exp %14 : vector<16x8xf32>
    %21 = arith.mulf %2, %20 : vector<16x8xf32>
    %22 = arith.addf %21, %19 : vector<16x8xf32>
    %23 = tpu.concatenate %1, %22 in 1 : vector<16x8xf32>, vector<16x8xf32> -> vector<16x16xf32>
    %c0_15 = arith.constant 0 : index
    %c0_16 = arith.constant 0 : index
    %24 = vector.load %arg8[%c0_15, %c0_16] : memref<16x16xf32, #tpu.memory_space<vmem>>, vector<16x16xf32>
    tpu.vector_store %arg8[%c0_15, %c0_16], %23 {strides = array<i32>} : memref<16x16xf32, #tpu.memory_space<vmem>>, vector<16x16xf32>,
    %cst_17 = arith.constant dense<0.000000e+00> : vector<16xf32>
    %25 = vector.multi_reduction <add>, %14, %cst_17 [1] : vector<16x8xf32> to vector<16xf32>
    %26 = vector.shape_cast %25 : vector<16xf32> to vector<16x1xf32>
    %c0_18 = arith.constant 0 : index
    %c0_19 = arith.constant 0 : index
    %27 = vector.load %arg9[%c0_18, %c0_19] : memref<16x1xf32, #tpu.memory_space<vmem>>, vector<16x1xf32>
    tpu.vector_store %arg9[%c0_18, %c0_19], %26 {strides = array<i32>} : memref<16x1xf32, #tpu.memory_space<vmem>>, vector<16x1xf32>,
    return
  }
  func.func @transform_0(%arg0: i32) -> (i32, i32) {
    %c0_i32 = arith.constant 0 : i32
    %c0_i32_0 = arith.constant 0 : i32
    return %arg0, %c0_i32 : i32, i32
  }
  func.func @transform_1(%arg0: i32) -> (i32, i32) {
    %c0_i32 = arith.constant 0 : i32
    %c0_i32_0 = arith.constant 0 : i32
    %c0_i32_1 = arith.constant 0 : i32
    return %c0_i32, %c0_i32_0 : i32, i32
  }
  func.func @transform_2(%arg0: i32) -> (i32, i32) {
    %c0_i32 = arith.constant 0 : i32
    %c0_i32_0 = arith.constant 0 : i32
    %c0_i32_1 = arith.constant 0 : i32
    return %c0_i32, %c0_i32_0 : i32, i32
  }
  func.func @transform_3(%arg0: i32) -> (i32, i32) {
    %c0_i32 = arith.constant 0 : i32
    %c0_i32_0 = arith.constant 0 : i32
    %c0_i32_1 = arith.constant 0 : i32
    return %c0_i32, %c0_i32_0 : i32, i32
  }
  func.func @transform_4(%arg0: i32) -> (i32, i32) {
    %c0_i32 = arith.constant 0 : i32
    %c0_i32_0 = arith.constant 0 : i32
    %c0_i32_1 = arith.constant 0 : i32
    return %c0_i32, %c0_i32_0 : i32, i32
  }
  func.func @transform_5(%arg0: i32) -> (i32, i32) {
    %c0_i32 = arith.constant 0 : i32
    %c0_i32_0 = arith.constant 0 : i32
    %c0_i32_1 = arith.constant 0 : i32
    return %c0_i32, %c0_i32_0 : i32, i32
  }
  func.func @transform_6(%arg0: i32) -> (i32, i32) {
    %c0_i32 = arith.constant 0 : i32
    %c0_i32_0 = arith.constant 0 : i32
    %c0_i32_1 = arith.constant 0 : i32
    return %c0_i32, %c0_i32_0 : i32, i32
  }
  func.func @transform_7(%arg0: i32) -> (i32, i32) {
    %c0_i32 = arith.constant 0 : i32
    %c0_i32_0 = arith.constant 0 : i32
    return %arg0, %c0_i32 : i32, i32
  }
  func.func @transform_8(%arg0: i32) -> (i32, i32) {
    %c0_i32 = arith.constant 0 : i32
    %c0_i32_0 = arith.constant 0 : i32
    return %arg0, %c0_i32 : i32, i32
  }
}

</mosaic_0001>

<llo_original>
// kernel: tpu_custom_call.1
$region0: #{tpu_custom_call.1}
  #allocation0 [shape = 'u32[]', space=smem, size = 0x4, offset = 0x4, fixed_abs, tag = 'smem constant byte address 0x4 - core index']
  #allocation1 [shape = 'u32[144,128]{1,0:T(1,128)}', space=vmem, size = 0x12000, scoped, tag = 'internal scratch']
  %s0 = inlined_call_operand.vmem [shape: f32[32,16], index: 0, kind: input, shape index: {}]
  %s1 = inlined_call_operand.vmem [shape: f32[8,32], index: 1, kind: input, shape index: {}]
  %s2 = inlined_call_operand.vmem [shape: f32[1,32], index: 2, kind: input, shape index: {}]
  %s3 = inlined_call_operand.vmem [shape: f32[32,8], index: 3, kind: input, shape index: {}]
  %s4 = inlined_call_operand.vmem [shape: f32[1,8], index: 4, kind: input, shape index: {}]
  %s5 = inlined_call_operand.vmem [shape: f32[32,8], index: 5, kind: input, shape index: {}]
  %s6 = inlined_call_operand.vmem [shape: f32[1,8], index: 6, kind: input, shape index: {}]
  %s7 = inlined_call_operand.vmem [shape: f32[32,16], index: 7, kind: output, shape index: {0}]
  %s8 = inlined_call_operand.vmem [shape: f32[32,1], index: 8, kind: output, shape index: {1}]
  %9 = xla_tuple %s7, %s8
  %s10 = sld [smem:[#allocation0]]
  $region69: #{tpu_custom_call.1} parent=0
    _
  %s12 = ssub.s32 1, %s10
  %s13 = scalar_select 0, %s12, %s10
  loop: start=0, step=1, limit=4
  $region2: #{tpu_custom_call.1} parent=0 // loop_pre_header
    _
  $region3: #{tpu_custom_call.1} parent=0 // loop_header
    %s15 = sphi 0, %s19
    %p16 = scmp.ge.s32.totalorder %s15, 4
    %s25 = sphi 0, %s27
    %s28 = sphi 0, %s25
    %s29 = sphi 0, %s28
    %s45 = sphi 0, %s29
    %s49 = sphi 0, %s49
    %s51 = sphi 0, %s49
    %s52 = sphi 0, %s51
    %s66 = sphi 0, %s52
    %s70 = sphi 0, %s70
    %s72 = sphi 0, %s70
    %s73 = sphi 0, %s72
    %s87 = sphi 0, %s73
    %s91 = sphi 0, %s91
    %s93 = sphi 0, %s91
    %s94 = sphi 0, %s93
    %s108 = sphi 0, %s94
    %s112 = sphi 0, %s112
    %s114 = sphi 0, %s112
    %s115 = sphi 0, %s114
    %s129 = sphi 0, %s115
    %s133 = sphi 0, %s133
    %s135 = sphi 0, %s133
    %s136 = sphi 0, %s135
    %s150 = sphi 0, %s136
    %s154 = sphi 0, %s154
    %s156 = sphi 0, %s154
    %s157 = sphi 0, %s156
    %s171 = sphi 0, %s157
    %s177 = sphi 0, %s179
    %s180 = sphi 0, %s177
    %s181 = sphi 0, %s180
    %s197 = sphi 0, %s181
    %s203 = sphi 0, %s205
    %s206 = sphi 0, %s203
    %s207 = sphi 0, %s206
    %s223 = sphi 0, %s207
  $region4: #{tpu_custom_call.1} parent=0 // loop_header_branch
    %18 = sbr.rel (%p16) target = $region8
  $region5: #{tpu_custom_call.1} parent=0 // loop_body
    %s20 = ssub.s32 %s15, 1
    %s21 = ssub.s32 %s15, 2
    %s22 = sadd.s32 %s15, 1
    %s23 = ssub.s32 %s15, %s22
    %p24 = scmp.eq.s32.totalorder %s23, 0
    %s26 = sadd.s32 %s25, 1
    %s27 = scalar_select %p24, %s25, %s26
    %p30 = pneg %p24
    %p31 = scmp.eq.s32.totalorder %s15, 1
    %p32 = por %p30, %p31
    %p33 = scmp.ne.s32.totalorder %s25, %s28
    %p34 = scmp.eq.s32.totalorder %s15, 0
    %p35 = por %p33, %p34
    %p36 = scmp.ne.s32.totalorder %s25, %s28
    %p37 = scmp.eq.s32.totalorder %s20, 1
    %p38 = por %p36, %p37
    %p39 = scmp.ne.s32.totalorder %s28, %s29
    %p40 = scmp.eq.s32.totalorder %s20, 0
    %p41 = por %p39, %p40
    %p42 = scmp.ne.s32.totalorder %s28, %s29
    %p43 = scmp.eq.s32.totalorder %s21, 1
    %p44 = por %p42, %p43
    %p46 = scmp.ne.s32.totalorder %s29, %s45
    %p47 = scmp.eq.s32.totalorder %s21, 0
    %p48 = por %p46, %p47
    %s50 = sadd.s32 %s49, 1
    %p53 = scmp.eq.s32.totalorder %s15, 1
    %p54 = scmp.ne.s32.totalorder %s49, %s51
    %p55 = scmp.eq.s32.totalorder %s15, 0
    %p56 = por %p54, %p55
    %p57 = scmp.ne.s32.totalorder %s49, %s51
    %p58 = scmp.eq.s32.totalorder %s20, 1
    %p59 = por %p57, %p58
    %p60 = scmp.ne.s32.totalorder %s51, %s52
    %p61 = scmp.eq.s32.totalorder %s20, 0
    %p62 = por %p60, %p61
    %p63 = scmp.ne.s32.totalorder %s51, %s52
    %p64 = scmp.eq.s32.totalorder %s21, 1
    %p65 = por %p63, %p64
    %p67 = scmp.ne.s32.totalorder %s52, %s66
    %p68 = scmp.eq.s32.totalorder %s21, 0
    %p69 = por %p67, %p68
    %s71 = sadd.s32 %s70, 1
    %p74 = scmp.eq.s32.totalorder %s15, 1
    %p75 = scmp.ne.s32.totalorder %s70, %s72
    %p76 = scmp.eq.s32.totalorder %s15, 0
    %p77 = por %p75, %p76
    %p78 = scmp.ne.s32.totalorder %s70, %s72
    %p79 = scmp.eq.s32.totalorder %s20, 1
    %p80 = por %p78, %p79
    %p81 = scmp.ne.s32.totalorder %s72, %s73
    %p82 = scmp.eq.s32.totalorder %s20, 0
    %p83 = por %p81, %p82
    %p84 = scmp.ne.s32.totalorder %s72, %s73
    %p85 = scmp.eq.s32.totalorder %s21, 1
    %p86 = por %p84, %p85
    %p88 = scmp.ne.s32.totalorder %s73, %s87
    %p89 = scmp.eq.s32.totalorder %s21, 0
    %p90 = por %p88, %p89
    %s92 = sadd.s32 %s91, 1
    %p95 = scmp.eq.s32.totalorder %s15, 1
    %p96 = scmp.ne.s32.totalorder %s91, %s93
    %p97 = scmp.eq.s32.totalorder %s15, 0
    %p98 = por %p96, %p97
    %p99 = scmp.ne.s32.totalorder %s91, %s93
    %p100 = scmp.eq.s32.totalorder %s20, 1
    %p101 = por %p99, %p100
    %p102 = scmp.ne.s32.totalorder %s93, %s94
    %p103 = scmp.eq.s32.totalorder %s20, 0
    %p104 = por %p102, %p103
    %p105 = scmp.ne.s32.totalorder %s93, %s94
    %p106 = scmp.eq.s32.totalorder %s21, 1
    %p107 = por %p105, %p106
    %p109 = scmp.ne.s32.totalorder %s94, %s108
    %p110 = scmp.eq.s32.totalorder %s21, 0
    %p111 = por %p109, %p110
    %s113 = sadd.s32 %s112, 1
    %p116 = scmp.eq.s32.totalorder %s15, 1
    %p117 = scmp.ne.s32.totalorder %s112, %s114
    %p118 = scmp.eq.s32.totalorder %s15, 0
    %p119 = por %p117, %p118
    %p120 = scmp.ne.s32.totalorder %s112, %s114
    %p121 = scmp.eq.s32.totalorder %s20, 1
    %p122 = por %p120, %p121
    %p123 = scmp.ne.s32.totalorder %s114, %s115
    %p124 = scmp.eq.s32.totalorder %s20, 0
    %p125 = por %p123, %p124
    %p126 = scmp.ne.s32.totalorder %s114, %s115
    %p127 = scmp.eq.s32.totalorder %s21, 1
    %p128 = por %p126, %p127
    %p130 = scmp.ne.s32.totalorder %s115, %s129
    %p131 = scmp.eq.s32.totalorder %s21, 0
    %p132 = por %p130, %p131
    %s134 = sadd.s32 %s133, 1
    %p137 = scmp.eq.s32.totalorder %s15, 1
    %p138 = scmp.ne.s32.totalorder %s133, %s135
    %p139 = scmp.eq.s32.totalorder %s15, 0
    %p140 = por %p138, %p139
    %p141 = scmp.ne.s32.totalorder %s133, %s135
    %p142 = scmp.eq.s32.totalorder %s20, 1
    %p143 = por %p141, %p142
    %p144 = scmp.ne.s32.totalorder %s135, %s136
    %p145 = scmp.eq.s32.totalorder %s20, 0
    %p146 = por %p144, %p145
    %p147 = scmp.ne.s32.totalorder %s135, %s136
    %p148 = scmp.eq.s32.totalorder %s21, 1
    %p149 = por %p147, %p148
    %p151 = scmp.ne.s32.totalorder %s136, %s150
    %p152 = scmp.eq.s32.totalorder %s21, 0
    %p153 = por %p151, %p152
    %s155 = sadd.s32 %s154, 1
    %p158 = scmp.eq.s32.totalorder %s15, 1
    %p159 = scmp.ne.s32.totalorder %s154, %s156
    %p160 = scmp.eq.s32.totalorder %s15, 0
    %p161 = por %p159, %p160
    %p162 = scmp.ne.s32.totalorder %s154, %s156
    %p163 = scmp.eq.s32.totalorder %s20, 1
    %p164 = por %p162, %p163
    %p165 = scmp.ne.s32.totalorder %s156, %s157
    %p166 = scmp.eq.s32.totalorder %s20, 0
    %p167 = por %p165, %p166
    %p168 = scmp.ne.s32.totalorder %s156, %s157
    %p169 = scmp.eq.s32.totalorder %s21, 1
    %p170 = por %p168, %p169
    %p172 = scmp.ne.s32.totalorder %s157, %s171
    %p173 = scmp.eq.s32.totalorder %s21, 0
    %p174 = por %p172, %p173
    %s175 = ssub.s32 %s15, %s22
    %p176 = scmp.eq.s32.totalorder %s175, 0
    %s178 = sadd.s32 %s177, 1
    %s179 = scalar_select %p176, %s177, %s178
    %p182 = pneg %p176
    %p183 = scmp.eq.s32.totalorder %s15, 1
    %p184 = por %p182, %p183
    %p185 = scmp.ne.s32.totalorder %s177, %s180
    %p186 = scmp.eq.s32.totalorder %s15, 0
    %p187 = por %p185, %p186
    %p188 = scmp.ne.s32.totalorder %s177, %s180
    %p189 = scmp.eq.s32.totalorder %s20, 1
    %p190 = por %p188, %p189
    %p191 = scmp.ne.s32.totalorder %s180, %s181
    %p192 = scmp.eq.s32.totalorder %s20, 0
    %p193 = por %p191, %p192
    %p194 = scmp.ne.s32.totalorder %s180, %s181
    %p195 = scmp.eq.s32.totalorder %s21, 1
    %p196 = por %p194, %p195
    %p198 = scmp.ne.s32.totalorder %s181, %s197
    %p199 = scmp.eq.s32.totalorder %s21, 0
    %p200 = por %p198, %p199
    %s201 = ssub.s32 %s15, %s22
    %p202 = scmp.eq.s32.totalorder %s201, 0
    %s204 = sadd.s32 %s203, 1
    %s205 = scalar_select %p202, %s203, %s204
    %p208 = pneg %p202
    %p209 = scmp.eq.s32.totalorder %s15, 1
    %p210 = por %p208, %p209
    %p211 = scmp.ne.s32.totalorder %s203, %s206
    %p212 = scmp.eq.s32.totalorder %s15, 0
    %p213 = por %p211, %p212
    %p214 = scmp.ne.s32.totalorder %s203, %s206
    %p215 = scmp.eq.s32.totalorder %s20, 1
    %p216 = por %p214, %p215
    %p217 = scmp.ne.s32.totalorder %s206, %s207
    %p218 = scmp.eq.s32.totalorder %s20, 0
    %p219 = por %p217, %p218
    %p220 = scmp.ne.s32.totalorder %s206, %s207
    %p221 = scmp.eq.s32.totalorder %s21, 1
    %p222 = por %p220, %p221
    %p224 = scmp.ne.s32.totalorder %s207, %s223
    %p225 = scmp.eq.s32.totalorder %s21, 0
    %p226 = por %p224, %p225
    %p227 = scmp.le.s32.totalorder 1, %s15
    %p228 = scmp.lt.s32.totalorder %s15, 3
    %p229 = pnand %p227, %p228
    %p230 = pneg %p229
    // Predicated region
    $region9: #{tpu_custom_call.1} parent=5 // pred_check
      _
    $region10: #{tpu_custom_call.1} parent=5 // pred_check_branch
      %232 = sbr.rel (%p229) target = $region12
    $region11: #{tpu_custom_call.1} parent=5 // pred_region
      %s233 = ssub.s32 %s15, 1
      // Predicated region
      $region13: #{tpu_custom_call.1} parent=11 // pred_check
        %p234 = pneg %p62
      $region14: #{tpu_custom_call.1} parent=11 // pred_check_branch
        %236 = sbr.rel (%p234) target = $region16
      $region15: #{tpu_custom_call.1} parent=11 // pred_region
        _
      $region16: #{tpu_custom_call.1} parent=11 // pred_fallthru
        _
      // Predicated region
      $region17: #{tpu_custom_call.1} parent=11 // pred_check
        %p237 = pneg %p83
      $region18: #{tpu_custom_call.1} parent=11 // pred_check_branch
        %239 = sbr.rel (%p237) target = $region20
      $region19: #{tpu_custom_call.1} parent=11 // pred_region
        _
      $region20: #{tpu_custom_call.1} parent=11 // pred_fallthru
        _
      // Predicated region
      $region21: #{tpu_custom_call.1} parent=11 // pred_check
        %p240 = pneg %p104
      $region22: #{tpu_custom_call.1} parent=11 // pred_check_branch
        %242 = sbr.rel (%p240) target = $region24
      $region23: #{tpu_custom_call.1} parent=11 // pred_region
        _
      $region24: #{tpu_custom_call.1} parent=11 // pred_fallthru
        _
      // Predicated region
      $region25: #{tpu_custom_call.1} parent=11 // pred_check
        %p243 = pneg %p125
      $region26: #{tpu_custom_call.1} parent=11 // pred_check_branch
        %245 = sbr.rel (%p243) target = $region28
      $region27: #{tpu_custom_call.1} parent=11 // pred_region
        _
      $region28: #{tpu_custom_call.1} parent=11 // pred_fallthru
        _
      // Predicated region
      $region29: #{tpu_custom_call.1} parent=11 // pred_check
        %p246 = pneg %p146
      $region30: #{tpu_custom_call.1} parent=11 // pred_check_branch
        %248 = sbr.rel (%p246) target = $region32
      $region31: #{tpu_custom_call.1} parent=11 // pred_region
        _
      $region32: #{tpu_custom_call.1} parent=11 // pred_fallthru
        _
      // Predicated region
      $region33: #{tpu_custom_call.1} parent=11 // pred_check
        %p249 = pneg %p167
      $region34: #{tpu_custom_call.1} parent=11 // pred_check_branch
        %251 = sbr.rel (%p249) target = $region36
      $region35: #{tpu_custom_call.1} parent=11 // pred_region
        _
      $region36: #{tpu_custom_call.1} parent=11 // pred_fallthru
        _
    $region12: #{tpu_custom_call.1} parent=5 // pred_fallthru
      _
    %p252 = scmp.lt.s32.totalorder %s15, 2
    // Predicated region
    $region37: #{tpu_custom_call.1} parent=5 // pred_check
      %p253 = pneg %p252
    $region38: #{tpu_custom_call.1} parent=5 // pred_check_branch
      %255 = sbr.rel (%p253) target = $region40
    $region39: #{tpu_custom_call.1} parent=5 // pred_region
      // Predicated region
      $region41: #{tpu_custom_call.1} parent=39 // pred_check
        %p256 = pneg %p35
      $region42: #{tpu_custom_call.1} parent=39 // pred_check_branch
        %258 = sbr.rel (%p256) target = $region44
      $region43: #{tpu_custom_call.1} parent=39 // pred_region
        %s259 = smul.u32 2, %s15
        %p260 = scmp.lt.s32.totalorder %s259, 3
        %s261 = scalar_select %p260, %s259, 3
        %s262 = smul.addr %s261, 8
        %s263 = scalar_lea.vmem %s0, %s262
        %s264 = smul.u32 2, %s15
      $region44: #{tpu_custom_call.1} parent=39 // pred_fallthru
        _
    $region40: #{tpu_custom_call.1} parent=5 // pred_fallthru
      _
    %p265 = scmp.le.s32.totalorder 1, %s15
    %p266 = scmp.lt.s32.totalorder %s15, 3
    %p267 = pnand %p265, %p266
    %p268 = pneg %p267
    // Predicated region
    $region45: #{tpu_custom_call.1} parent=5 // pred_check
      _
    $region46: #{tpu_custom_call.1} parent=5 // pred_check_branch
      %270 = sbr.rel (%p267) target = $region48
    $region47: #{tpu_custom_call.1} parent=5 // pred_region
      %s271 = ssub.s32 %s15, 1
      %s272 = smul.u32 2, %s20
      %p273 = scmp.lt.s32.totalorder %s272, 3
      %s274 = scalar_select %p273, %s272, 3
      %s275 = smul.addr %s274, 8
      %s276 = scalar_lea.vmem %s0, %s275
      %p277 = pneg %p41
      %p278 = pneg %p38
      %p279 = pneg %p62
      %p280 = pneg %p59
      %p281 = pneg %p83
      %p282 = pneg %p80
      %p283 = pneg %p104
      %p284 = pneg %p101
      %p285 = pneg %p125
      %p286 = pneg %p122
      %p287 = pneg %p146
      %p288 = pneg %p143
      %p289 = pneg %p167
      %p290 = pneg %p164
      %p291 = pneg %p193
      %p292 = pneg %p190
      %s293 = smul.u32 2, %s20
      %p294 = scmp.lt.s32.totalorder %s293, 3
      %s295 = scalar_select %p294, %s293, 3
      %s296 = smul.addr %s295, 8
      %s297 = scalar_lea.vmem %s7, %s296
      %p298 = pneg %p219
      %p299 = pneg %p216
      %s300 = smul.u32 2, %s20
      %p301 = scmp.lt.s32.totalorder %s300, 3
      %s302 = scalar_select %p301, %s300, 3
      %s303 = smul.addr %s302, 8
      %s304 = scalar_lea.vmem %s8, %s303
      %s305 = smul.u32 2, %s20
      %p306 = scmp.lt.s32.totalorder %s305, 3
      %s307 = scalar_select %p306, %s305, 3
      %s308 = smul.addr %s307, 8
      %s309 = scalar_lea.vmem %s0, %s308
      %s310 = smul.u32 2, %s20
      %s311 = smul.u32 2, %s20
      %p312 = scmp.lt.s32.totalorder %s311, 3
      %s313 = scalar_select %p312, %s311, 3
      %s314 = smul.addr %s313, 8
      %s315 = scalar_lea.vmem %s7, %s314
      %s316 = smul.u32 2, %s20
      %s317 = smul.u32 2, %s20
      %p318 = scmp.lt.s32.totalorder %s317, 3
      %s319 = scalar_select %p318, %s317, 3
      %s320 = smul.addr %s319, 8
      %s321 = scalar_lea.vmem %s8, %s320
      %s322 = smul.u32 2, %s20
      %v323 = vld [vmem:[%s309] sm:$0xff]
      %v324 = vld [vmem:[%s309 + $0x8] sm:$0xff]
      %v325 = vld [vmem:[%s1] sm:$0xff]
      %v326 = vld [vmem:[%s2] sm:$0x1]
      %v328 = vlaneseq
      %v329 = vshrl.u32 %v328, 7
      %v330 = vsub.s32 0, %v329
      %v331 = vrot.slane %v326, %v330
      %vm333 = vcmask 64512
      %v335 = vsel %vm333, %v323, 0
      %v338 = vsel %vm333, %v324, 0
      %340 = vmatprep.subr.mxu0 0.0
      %341 = vmatpush1.msra.mxu0 %v325
      %342 = vmatprep.subr.mxu0 0.0
      %343 = vmatpush1.msra.mxu0 0.0
      %344 = vmatprep.subr.mxu0 0.0
      %345 = vmatpush1.msra.mxu0 0.0
      %346 = vmatprep.subr.mxu0 0.0
      %347 = vmatpush1.msra.mxu0 0.0
      %348 = vmatprep.subr.mxu0 0.0
      %349 = vmatpush1.msra.mxu0 0.0
      %350 = vmatprep.subr.mxu0 0.0
      %351 = vmatpush1.msra.mxu0 0.0
      %352 = vmatprep.subr.mxu0 0.0
      %353 = vmatpush1.msra.mxu0 0.0
      %354 = vmatprep.subr.mxu0 0.0
      %355 = vmatpush1.msra.mxu0 0.0
      %356 = vmatprep.subr.mxu0 0.0
      %357 = vmatpush1.msra.mxu0 0.0
      %358 = vmatprep.subr.mxu0 0.0
      %359 = vmatpush1.msra.mxu0 0.0
      %360 = vmatprep.subr.mxu0 0.0
      %361 = vmatpush1.msra.mxu0 0.0
      %362 = vmatprep.subr.mxu0 0.0
      %363 = vmatpush1.msra.mxu0 0.0
      %364 = vmatprep.subr.mxu0 0.0
      %365 = vmatpush1.msra.mxu0 0.0
      %366 = vmatprep.subr.mxu0 0.0
      %367 = vmatpush1.msra.mxu0 0.0
      %368 = vmatprep.subr.mxu0 0.0
      %369 = vmatpush1.msra.mxu0 0.0
      %370 = vmatprep.subr.mxu0 0.0
      %371 = vmatpush1.msra.mxu0 0.0
      %372 = vmatprep.subr.mxu0 0.0
      %373 = vmatpush1.msra.mxu0 0.0
      %374 = vmatprep.subr.mxu0 0.0
      %375 = vmatpush1.msra.mxu0 0.0
      %376 = vmatprep.subr.mxu0 0.0
      %377 = vmatpush1.msra.mxu0 0.0
      %378 = vmatprep.subr.mxu0 0.0
      %379 = vmatpush1.msra.mxu0 0.0
      %380 = vmatprep.subr.mxu0 0.0
      %381 = vmatpush1.msra.mxu0 0.0
      %382 = vmatprep.subr.mxu0 0.0
      %383 = vmatpush1.msra.mxu0 0.0
      %384 = vmatprep.subr.mxu0 0.0
      %385 = vmatpush1.msra.mxu0 0.0
      %386 = vmatprep.subr.mxu0 0.0
      %387 = vmatpush1.msra.mxu0 0.0
      %388 = vmatprep.subr.mxu0 0.0
      %389 = vmatpush1.msra.mxu0 0.0
      %390 = vmatprep.subr.mxu0 0.0
      %391 = vmatpush1.msra.mxu0 0.0
      %392 = vmatprep.subr.mxu0 0.0
      %393 = vmatpush1.msra.mxu0 0.0
      %394 = vmatprep.subr.mxu0 0.0
      %395 = vmatpush1.msra.mxu0 0.0
      %396 = vmatprep.subr.mxu0 0.0
      %397 = vmatpush1.msra.mxu0 0.0
      %398 = vmatprep.subr.mxu0 0.0
      %399 = vmatpush1.msra.mxu0 0.0
      %400 = vmatprep.subr.mxu0 0.0
      %401 = vmatpush1.msra.mxu0 0.0
      %402 = vmatprep.subr.mxu0 0.0
      %403 = vmatpush1.msra.mxu0 0.0
      %404 = vmatprep.mubr.f32.mxu0 0.0
      %405 = vmatmul.mubr.f32.gmra.mrb[0].mxu0 %v335
      %v406 = vpop.f32.mrb[0].mxu0
      %v407 = vadd.f32 %v331, %v406
      %v408 = vpop.f32.mrb[0].mxu0
      %409 = vmatprep.mubr.f32.mxu0 0.0
      %410 = vmatmul.mubr.f32.gmra.mrb[0].mxu0 %v338
      %v411 = vpop.f32.mrb[0].mxu0
      %v412 = vadd.f32 %v331, %v411
      %v413 = vpop.f32.mrb[0].mxu0
      %414 = vdwg.mxu0
      %v415 = vtanh.pop %v407
      %v416 = vtanh.pop %v412
      %v417 = vld [vmem:[%s3] sm:$0xff]
      %v418 = vld [vmem:[%s3 + $0x8] sm:$0xff]
      %v419 = vld [vmem:[%s3 + $0x10] sm:$0xff]
      %v420 = vld [vmem:[%s3 + $0x18] sm:$0xff]
      %v421 = vld [vmem:[%s4] sm:$0x1]
      %v423 = vlaneseq
      %v424 = vshrl.u32 %v423, 7
      %v425 = vsub.s32 0, %v424
      %v426 = vrot.slane %v421, %v425
      %vm428 = vcmask 261120
      %v430 = vsel %vm428, %v415, 0
      %v433 = vsel %vm428, %v416, 0
      %435 = vmatprep.subr.mxu0 0.0
      %436 = vmatpush1.msra.mxu0 %v417
      %437 = vmatprep.subr.mxu0 0.0
      %438 = vmatpush1.msra.mxu0 %v418
      %439 = vmatprep.subr.mxu0 0.0
      %440 = vmatpush1.msra.mxu0 %v419
      %441 = vmatprep.subr.mxu0 0.0
      %442 = vmatpush1.msra.mxu0 %v420
      %443 = vmatprep.subr.mxu0 0.0
      %444 = vmatpush1.msra.mxu0 0.0
      %445 = vmatprep.subr.mxu0 0.0
      %446 = vmatpush1.msra.mxu0 0.0
      %447 = vmatprep.subr.mxu0 0.0
      %448 = vmatpush1.msra.mxu0 0.0
      %449 = vmatprep.subr.mxu0 0.0
      %450 = vmatpush1.msra.mxu0 0.0
      %451 = vmatprep.subr.mxu0 0.0
      %452 = vmatpush1.msra.mxu0 0.0
      %453 = vmatprep.subr.mxu0 0.0
      %454 = vmatpush1.msra.mxu0 0.0
      %455 = vmatprep.subr.mxu0 0.0
      %456 = vmatpush1.msra.mxu0 0.0
      %457 = vmatprep.subr.mxu0 0.0
      %458 = vmatpush1.msra.mxu0 0.0
      %459 = vmatprep.subr.mxu0 0.0
      %460 = vmatpush1.msra.mxu0 0.0
      %461 = vmatprep.subr.mxu0 0.0
      %462 = vmatpush1.msra.mxu0 0.0
      %463 = vmatprep.subr.mxu0 0.0
      %464 = vmatpush1.msra.mxu0 0.0
      %465 = vmatprep.subr.mxu0 0.0
      %466 = vmatpush1.msra.mxu0 0.0
      %467 = vmatprep.subr.mxu0 0.0
      %468 = vmatpush1.msra.mxu0 0.0
      %469 = vmatprep.subr.mxu0 0.0
      %470 = vmatpush1.msra.mxu0 0.0
      %471 = vmatprep.subr.mxu0 0.0
      %472 = vmatpush1.msra.mxu0 0.0
      %473 = vmatprep.subr.mxu0 0.0
      %474 = vmatpush1.msra.mxu0 0.0
      %475 = vmatprep.subr.mxu0 0.0
      %476 = vmatpush1.msra.mxu0 0.0
      %477 = vmatprep.subr.mxu0 0.0
      %478 = vmatpush1.msra.mxu0 0.0
      %479 = vmatprep.subr.mxu0 0.0
      %480 = vmatpush1.msra.mxu0 0.0
      %481 = vmatprep.subr.mxu0 0.0
      %482 = vmatpush1.msra.mxu0 0.0
      %483 = vmatprep.subr.mxu0 0.0
      %484 = vmatpush1.msra.mxu0 0.0
      %485 = vmatprep.subr.mxu0 0.0
      %486 = vmatpush1.msra.mxu0 0.0
      %487 = vmatprep.subr.mxu0 0.0
      %488 = vmatpush1.msra.mxu0 0.0
      %489 = vmatprep.subr.mxu0 0.0
      %490 = vmatpush1.msra.mxu0 0.0
      %491 = vmatprep.subr.mxu0 0.0
      %492 = vmatpush1.msra.mxu0 0.0
      %493 = vmatprep.subr.mxu0 0.0
      %494 = vmatpush1.msra.mxu0 0.0
      %495 = vmatprep.subr.mxu0 0.0
      %496 = vmatpush1.msra.mxu0 0.0
      %497 = vmatprep.subr.mxu0 0.0
      %498 = vmatpush1.msra.mxu0 0.0
      %499 = vmatprep.mubr.f32.mxu0 0.0
      %500 = vmatmul.mubr.f32.gmra.mrb[0].mxu0 %v430
      %v501 = vpop.f32.mrb[0].mxu0
      %v502 = vadd.f32 %v426, %v501
      %v503 = vpop.f32.mrb[0].mxu0
      %504 = vmatprep.mubr.f32.mxu0 0.0
      %505 = vmatmul.mubr.f32.gmra.mrb[0].mxu0 %v433
      %v506 = vpop.f32.mrb[0].mxu0
      %v507 = vadd.f32 %v426, %v506
      %v508 = vpop.f32.mrb[0].mxu0
      %509 = vdwg.mxu0
      %v510 = vtanh.pop %v502
      %v511 = vtanh.pop %v507
      %v512 = vld [vmem:[%s5] sm:$0xff]
      %v513 = vld [vmem:[%s5 + $0x8] sm:$0xff]
      %v514 = vld [vmem:[%s5 + $0x10] sm:$0xff]
      %v515 = vld [vmem:[%s5 + $0x18] sm:$0xff]
      %v516 = vld [vmem:[%s6] sm:$0x1]
      %v518 = vlaneseq
      %v519 = vshrl.u32 %v518, 7
      %v520 = vsub.s32 0, %v519
      %v521 = vrot.slane %v516, %v520
      %523 = vmatprep.subr.mxu0 0.0
      %524 = vmatpush1.msra.mxu0 %v512
      %525 = vmatprep.subr.mxu0 0.0
      %526 = vmatpush1.msra.mxu0 %v513
      %527 = vmatprep.subr.mxu0 0.0
      %528 = vmatpush1.msra.mxu0 %v514
      %529 = vmatprep.subr.mxu0 0.0
      %530 = vmatpush1.msra.mxu0 %v515
      %531 = vmatprep.subr.mxu0 0.0
      %532 = vmatpush1.msra.mxu0 0.0
      %533 = vmatprep.subr.mxu0 0.0
      %534 = vmatpush1.msra.mxu0 0.0
      %535 = vmatprep.subr.mxu0 0.0
      %536 = vmatpush1.msra.mxu0 0.0
      %537 = vmatprep.subr.mxu0 0.0
      %538 = vmatpush1.msra.mxu0 0.0
      %539 = vmatprep.subr.mxu0 0.0
      %540 = vmatpush1.msra.mxu0 0.0
      %541 = vmatprep.subr.mxu0 0.0
      %542 = vmatpush1.msra.mxu0 0.0
      %543 = vmatprep.subr.mxu0 0.0
      %544 = vmatpush1.msra.mxu0 0.0
      %545 = vmatprep.subr.mxu0 0.0
      %546 = vmatpush1.msra.mxu0 0.0
      %547 = vmatprep.subr.mxu0 0.0
      %548 = vmatpush1.msra.mxu0 0.0
      %549 = vmatprep.subr.mxu0 0.0
      %550 = vmatpush1.msra.mxu0 0.0
      %551 = vmatprep.subr.mxu0 0.0
      %552 = vmatpush1.msra.mxu0 0.0
      %553 = vmatprep.subr.mxu0 0.0
      %554 = vmatpush1.msra.mxu0 0.0
      %555 = vmatprep.subr.mxu0 0.0
      %556 = vmatpush1.msra.mxu0 0.0
      %557 = vmatprep.subr.mxu0 0.0
      %558 = vmatpush1.msra.mxu0 0.0
      %559 = vmatprep.subr.mxu0 0.0
      %560 = vmatpush1.msra.mxu0 0.0
      %561 = vmatprep.subr.mxu0 0.0
      %562 = vmatpush1.msra.mxu0 0.0
      %563 = vmatprep.subr.mxu0 0.0
      %564 = vmatpush1.msra.mxu0 0.0
      %565 = vmatprep.subr.mxu0 0.0
      %566 = vmatpush1.msra.mxu0 0.0
      %567 = vmatprep.subr.mxu0 0.0
      %568 = vmatpush1.msra.mxu0 0.0
      %569 = vmatprep.subr.mxu0 0.0
      %570 = vmatpush1.msra.mxu0 0.0
      %571 = vmatprep.subr.mxu0 0.0
      %572 = vmatpush1.msra.mxu0 0.0
      %573 = vmatprep.subr.mxu0 0.0
      %574 = vmatpush1.msra.mxu0 0.0
      %575 = vmatprep.subr.mxu0 0.0
      %576 = vmatpush1.msra.mxu0 0.0
      %577 = vmatprep.subr.mxu0 0.0
      %578 = vmatpush1.msra.mxu0 0.0
      %579 = vmatprep.subr.mxu0 0.0
      %580 = vmatpush1.msra.mxu0 0.0
      %581 = vmatprep.subr.mxu0 0.0
      %582 = vmatpush1.msra.mxu0 0.0
      %583 = vmatprep.subr.mxu0 0.0
      %584 = vmatpush1.msra.mxu0 0.0
      %585 = vmatprep.subr.mxu0 0.0
      %586 = vmatpush1.msra.mxu0 0.0
      %587 = vmatprep.mubr.f32.mxu0 0.0
      %588 = vmatmul.mubr.f32.gmra.mrb[0].mxu0 %v430
      %v589 = vpop.f32.mrb[0].mxu0
      %v590 = vadd.f32 %v521, %v589
      %v591 = vpop.f32.mrb[0].mxu0
      %592 = vmatprep.mubr.f32.mxu0 0.0
      %593 = vmatmul.mubr.f32.gmra.mrb[0].mxu0 %v433
      %v594 = vpop.f32.mrb[0].mxu0
      %v595 = vadd.f32 %v521, %v594
      %v596 = vpop.f32.mrb[0].mxu0
      %597 = vdwg.mxu0
      %v598 = vmul.f32 %v510, 1.442695
      %v599 = vpow.pop %v598
      %v600 = vmul.f32 %v511, 1.442695
      %v601 = vpow.pop %v600
      %604 = vrot.lane.b32.xlu0 %v599, 8
      %v605 = vpop.permute.xlu0 %604
      %606 = vrot.lane.b32.xlu0 %v601, 8
      %v607 = vpop.permute.xlu0 %606
      %v610 = vmul.f32 %v323, %v605
      %v611 = vmul.f32 %v324, %v607
      %614 = vrot.lane.b32.xlu0 %v590, 8
      %v615 = vpop.permute.xlu0 %614
      %616 = vrot.lane.b32.xlu0 %v595, 8
      %v617 = vpop.permute.xlu0 %616
      %v620 = vadd.f32 %v610, %v615
      %v621 = vadd.f32 %v611, %v617
      %v622 = vsel %vm333, %v323, %v620
      %v623 = vsel %vm333, %v324, %v621
      %vm624 = vcmask 130048
      %625 = vst.msk [vmem:[%s315] sm:$0xff] %vm624, %v622
      %626 = vst.msk [vmem:[%s315 + $0x8] sm:$0xff] %vm624, %v623
      %v627 = vsel %vm333, %v510, 0.0
      %628 = vadd.xlane.f32.xlu0 %v627
      %v629 = vpop.xlane.xlu0 %628
      %v630 = vsel %vm333, %v511, 0.0
      %631 = vadd.xlane.f32.xlu0 %v630
      %v632 = vpop.xlane.xlu0 %631
      %vm633 = vcmask 7168
      %634 = vst.msk [vmem:[%s321] sm:$0xff] %vm633, %v629
      %635 = vst.msk [vmem:[%s321 + $0x8] sm:$0xff] %vm633, %v632
      %s636 = smul.u32 2, %s20
      %p637 = scmp.lt.s32.totalorder %s636, 3
      %s638 = scalar_select %p637, %s636, 3
      %s639 = smul.addr %s638, 8
      %s640 = scalar_lea.vmem %s7, %s639
      %s641 = smul.u32 2, %s20
      %p642 = scmp.lt.s32.totalorder %s641, 3
      %s643 = scalar_select %p642, %s641, 3
      %s644 = smul.addr %s643, 8
      %s645 = scalar_lea.vmem %s8, %s644
      // Predicated region
      $region49: #{tpu_custom_call.1} parent=47 // pred_check
        %p646 = pneg %p190
      $region50: #{tpu_custom_call.1} parent=47 // pred_check_branch
        %648 = sbr.rel (%p646) target = $region52
      $region51: #{tpu_custom_call.1} parent=47 // pred_region
        %s649 = smul.u32 2, %s20
      $region52: #{tpu_custom_call.1} parent=47 // pred_fallthru
        _
      // Predicated region
      $region53: #{tpu_custom_call.1} parent=47 // pred_check
        %p650 = pneg %p216
      $region54: #{tpu_custom_call.1} parent=47 // pred_check_branch
        %652 = sbr.rel (%p650) target = $region56
      $region55: #{tpu_custom_call.1} parent=47 // pred_region
        %s653 = smul.u32 2, %s20
      $region56: #{tpu_custom_call.1} parent=47 // pred_fallthru
        _
    $region48: #{tpu_custom_call.1} parent=5 // pred_fallthru
      _
    %p654 = scmp.le.s32.totalorder 2, %s15
    // Predicated region
    $region57: #{tpu_custom_call.1} parent=5 // pred_check
      %p655 = pneg %p654
    $region58: #{tpu_custom_call.1} parent=5 // pred_check_branch
      %657 = sbr.rel (%p655) target = $region60
    $region59: #{tpu_custom_call.1} parent=5 // pred_region
      %s658 = ssub.s32 %s15, 2
      // Predicated region
      $region61: #{tpu_custom_call.1} parent=59 // pred_check
        %p659 = pneg %p196
      $region62: #{tpu_custom_call.1} parent=59 // pred_check_branch
        %661 = sbr.rel (%p659) target = $region64
      $region63: #{tpu_custom_call.1} parent=59 // pred_region
        %s662 = smul.u32 2, %s21
        %p663 = scmp.lt.s32.totalorder %s662, 3
        %s664 = scalar_select %p663, %s662, 3
        %s665 = smul.addr %s664, 8
        %s666 = scalar_lea.vmem %s7, %s665
      $region64: #{tpu_custom_call.1} parent=59 // pred_fallthru
        _
      // Predicated region
      $region65: #{tpu_custom_call.1} parent=59 // pred_check
        %p667 = pneg %p222
      $region66: #{tpu_custom_call.1} parent=59 // pred_check_branch
        %669 = sbr.rel (%p667) target = $region68
      $region67: #{tpu_custom_call.1} parent=59 // pred_region
        %s670 = smul.u32 2, %s21
        %p671 = scmp.lt.s32.totalorder %s670, 3
        %s672 = scalar_select %p671, %s670, 3
        %s673 = smul.addr %s672, 8
        %s674 = scalar_lea.vmem %s8, %s673
      $region68: #{tpu_custom_call.1} parent=59 // pred_fallthru
        _
    $region60: #{tpu_custom_call.1} parent=5 // pred_fallthru
      _
  $region6: #{tpu_custom_call.1} parent=0 // loop_footer
    %s19 = sadd.s32 1, %s15
  $region7: #{tpu_custom_call.1} parent=0 // loop_footer_branch
    %14 = sbr.rel target = $region3
  $region8: #{tpu_custom_call.1} parent=0 // loop_exit
    _

// kernel: tpu_custom_call.1
$region0: #{tpu_custom_call.1}
  #allocation0 [shape = 'u32[]', space=smem, size = 0x4, offset = 0x4, fixed_abs, tag = 'smem constant byte address 0x4 - core index']
  #allocation1 [shape = 'u32[144,128]{1,0:T(1,128)}', space=vmem, size = 0x12000, scoped, tag = 'internal scratch']
  %s0 = inlined_call_operand.vmem [shape: f32[32,16], index: 0, kind: input, shape index: {}]
  %s1 = inlined_call_operand.vmem [shape: f32[8,32], index: 1, kind: input, shape index: {}]
  %s2 = inlined_call_operand.vmem [shape: f32[1,32], index: 2, kind: input, shape index: {}]
  %s3 = inlined_call_operand.vmem [shape: f32[32,8], index: 3, kind: input, shape index: {}]
  %s4 = inlined_call_operand.vmem [shape: f32[1,8], index: 4, kind: input, shape index: {}]
  %s5 = inlined_call_operand.vmem [shape: f32[32,8], index: 5, kind: input, shape index: {}]
  %s6 = inlined_call_operand.vmem [shape: f32[1,8], index: 6, kind: input, shape index: {}]
  %s7 = inlined_call_operand.vmem [shape: f32[32,16], index: 7, kind: output, shape index: {0}]
  %s8 = inlined_call_operand.vmem [shape: f32[32,1], index: 8, kind: output, shape index: {1}]
  %9 = xla_tuple %s7, %s8
  %s10 = sld [smem:[#allocation0]]
  $region69: #{tpu_custom_call.1} parent=0
    _
  %s12 = ssub.s32 1, %s10
  %s13 = scalar_select 0, %s12, %s10
  loop: start=0, step=1, limit=4
  $region2: #{tpu_custom_call.1} parent=0 // loop_pre_header
    _
  $region3: #{tpu_custom_call.1} parent=0 // loop_header
    %s15 = sphi 0, %s19
    %p16 = scmp.ge.s32.totalorder %s15, 4
    %s25 = sphi 0, %s27
    %s28 = sphi 0, %s25
    %s29 = sphi 0, %s28
    %s45 = sphi 0, %s29
    %s49 = sphi 0, %s49
    %s51 = sphi 0, %s49
    %s52 = sphi 0, %s51
    %s66 = sphi 0, %s52
    %s70 = sphi 0, %s70
    %s72 = sphi 0, %s70
    %s73 = sphi 0, %s72
    %s87 = sphi 0, %s73
    %s91 = sphi 0, %s91
    %s93 = sphi 0, %s91
    %s94 = sphi 0, %s93
    %s108 = sphi 0, %s94
    %s112 = sphi 0, %s112
    %s114 = sphi 0, %s112
    %s115 = sphi 0, %s114
    %s129 = sphi 0, %s115
    %s133 = sphi 0, %s133
    %s135 = sphi 0, %s133
    %s136 = sphi 0, %s135
    %s150 = sphi 0, %s136
    %s154 = sphi 0, %s154
    %s156 = sphi 0, %s154
    %s157 = sphi 0, %s156
    %s171 = sphi 0, %s157
    %s177 = sphi 0, %s179
    %s180 = sphi 0, %s177
    %s181 = sphi 0, %s180
    %s197 = sphi 0, %s181
    %s203 = sphi 0, %s205
    %s206 = sphi 0, %s203
    %s207 = sphi 0, %s206
    %s223 = sphi 0, %s207
  $region4: #{tpu_custom_call.1} parent=0 // loop_header_branch
    %18 = sbr.rel (%p16) target = $region8
  $region5: #{tpu_custom_call.1} parent=0 // loop_body
    %s20 = ssub.s32 %s15, 1
    %s21 = ssub.s32 %s15, 2
    %s22 = sadd.s32 %s15, 1
    %s23 = ssub.s32 %s15, %s22
    %p24 = scmp.eq.s32.totalorder %s23, 0
    %s26 = sadd.s32 %s25, 1
    %s27 = scalar_select %p24, %s25, %s26
    %p30 = pneg %p24
    %p31 = scmp.eq.s32.totalorder %s15, 1
    %p32 = por %p30, %p31
    %p33 = scmp.ne.s32.totalorder %s25, %s28
    %p34 = scmp.eq.s32.totalorder %s15, 0
    %p35 = por %p33, %p34
    %p36 = scmp.ne.s32.totalorder %s25, %s28
    %p37 = scmp.eq.s32.totalorder %s20, 1
    %p38 = por %p36, %p37
    %p39 = scmp.ne.s32.totalorder %s28, %s29
    %p40 = scmp.eq.s32.totalorder %s20, 0
    %p41 = por %p39, %p40
    %p42 = scmp.ne.s32.totalorder %s28, %s29
    %p43 = scmp.eq.s32.totalorder %s21, 1
    %p44 = por %p42, %p43
    %p46 = scmp.ne.s32.totalorder %s29, %s45
    %p47 = scmp.eq.s32.totalorder %s21, 0
    %p48 = por %p46, %p47
    %s50 = sadd.s32 %s49, 1
    %p53 = scmp.eq.s32.totalorder %s15, 1
    %p54 = scmp.ne.s32.totalorder %s49, %s51
    %p55 = scmp.eq.s32.totalorder %s15, 0
    %p56 = por %p54, %p55
    %p57 = scmp.ne.s32.totalorder %s49, %s51
    %p58 = scmp.eq.s32.totalorder %s20, 1
    %p59 = por %p57, %p58
    %p60 = scmp.ne.s32.totalorder %s51, %s52
    %p61 = scmp.eq.s32.totalorder %s20, 0
    %p62 = por %p60, %p61
    %p63 = scmp.ne.s32.totalorder %s51, %s52
    %p64 = scmp.eq.s32.totalorder %s21, 1
    %p65 = por %p63, %p64
    %p67 = scmp.ne.s32.totalorder %s52, %s66
    %p68 = scmp.eq.s32.totalorder %s21, 0
    %p69 = por %p67, %p68
    %s71 = sadd.s32 %s70, 1
    %p74 = scmp.eq.s32.totalorder %s15, 1
    %p75 = scmp.ne.s32.totalorder %s70, %s72
    %p76 = scmp.eq.s32.totalorder %s15, 0
    %p77 = por %p75, %p76
    %p78 = scmp.ne.s32.totalorder %s70, %s72
    %p79 = scmp.eq.s32.totalorder %s20, 1
    %p80 = por %p78, %p79
    %p81 = scmp.ne.s32.totalorder %s72, %s73
    %p82 = scmp.eq.s32.totalorder %s20, 0
    %p83 = por %p81, %p82
    %p84 = scmp.ne.s32.totalorder %s72, %s73
    %p85 = scmp.eq.s32.totalorder %s21, 1
    %p86 = por %p84, %p85
    %p88 = scmp.ne.s32.totalorder %s73, %s87
    %p89 = scmp.eq.s32.totalorder %s21, 0
    %p90 = por %p88, %p89
    %s92 = sadd.s32 %s91, 1
    %p95 = scmp.eq.s32.totalorder %s15, 1
    %p96 = scmp.ne.s32.totalorder %s91, %s93
    %p97 = scmp.eq.s32.totalorder %s15, 0
    %p98 = por %p96, %p97
    %p99 = scmp.ne.s32.totalorder %s91, %s93
    %p100 = scmp.eq.s32.totalorder %s20, 1
    %p101 = por %p99, %p100
    %p102 = scmp.ne.s32.totalorder %s93, %s94
    %p103 = scmp.eq.s32.totalorder %s20, 0
    %p104 = por %p102, %p103
    %p105 = scmp.ne.s32.totalorder %s93, %s94
    %p106 = scmp.eq.s32.totalorder %s21, 1
    %p107 = por %p105, %p106
    %p109 = scmp.ne.s32.totalorder %s94, %s108
    %p110 = scmp.eq.s32.totalorder %s21, 0
    %p111 = por %p109, %p110
    %s113 = sadd.s32 %s112, 1
    %p116 = scmp.eq.s32.totalorder %s15, 1
    %p117 = scmp.ne.s32.totalorder %s112, %s114
    %p118 = scmp.eq.s32.totalorder %s15, 0
    %p119 = por %p117, %p118
    %p120 = scmp.ne.s32.totalorder %s112, %s114
    %p121 = scmp.eq.s32.totalorder %s20, 1
    %p122 = por %p120, %p121
    %p123 = scmp.ne.s32.totalorder %s114, %s115
    %p124 = scmp.eq.s32.totalorder %s20, 0
    %p125 = por %p123, %p124
    %p126 = scmp.ne.s32.totalorder %s114, %s115
    %p127 = scmp.eq.s32.totalorder %s21, 1
    %p128 = por %p126, %p127
    %p130 = scmp.ne.s32.totalorder %s115, %s129
    %p131 = scmp.eq.s32.totalorder %s21, 0
    %p132 = por %p130, %p131
    %s134 = sadd.s32 %s133, 1
    %p137 = scmp.eq.s32.totalorder %s15, 1
    %p138 = scmp.ne.s32.totalorder %s133, %s135
    %p139 = scmp.eq.s32.totalorder %s15, 0
    %p140 = por %p138, %p139
    %p141 = scmp.ne.s32.totalorder %s133, %s135
    %p142 = scmp.eq.s32.totalorder %s20, 1
    %p143 = por %p141, %p142
    %p144 = scmp.ne.s32.totalorder %s135, %s136
    %p145 = scmp.eq.s32.totalorder %s20, 0
    %p146 = por %p144, %p145
    %p147 = scmp.ne.s32.totalorder %s135, %s136
    %p148 = scmp.eq.s32.totalorder %s21, 1
    %p149 = por %p147, %p148
    %p151 = scmp.ne.s32.totalorder %s136, %s150
    %p152 = scmp.eq.s32.totalorder %s21, 0
    %p153 = por %p151, %p152
    %s155 = sadd.s32 %s154, 1
    %p158 = scmp.eq.s32.totalorder %s15, 1
    %p159 = scmp.ne.s32.totalorder %s154, %s156
    %p160 = scmp.eq.s32.totalorder %s15, 0
    %p161 = por %p159, %p160
    %p162 = scmp.ne.s32.totalorder %s154, %s156
    %p163 = scmp.eq.s32.totalorder %s20, 1
    %p164 = por %p162, %p163
    %p165 = scmp.ne.s32.totalorder %s156, %s157
    %p166 = scmp.eq.s32.totalorder %s20, 0
    %p167 = por %p165, %p166
    %p168 = scmp.ne.s32.totalorder %s156, %s157
    %p169 = scmp.eq.s32.totalorder %s21, 1
    %p170 = por %p168, %p169
    %p172 = scmp.ne.s32.totalorder %s157, %s171
    %p173 = scmp.eq.s32.totalorder %s21, 0
    %p174 = por %p172, %p173
    %s175 = ssub.s32 %s15, %s22
    %p176 = scmp.eq.s32.totalorder %s175, 0
    %s178 = sadd.s32 %s177, 1
    %s179 = scalar_select %p176, %s177, %s178
    %p182 = pneg %p176
    %p183 = scmp.eq.s32.totalorder %s15, 1
    %p184 = por %p182, %p183
    %p185 = scmp.ne.s32.totalorder %s177, %s180
    %p186 = scmp.eq.s32.totalorder %s15, 0
    %p187 = por %p185, %p186
    %p188 = scmp.ne.s32.totalorder %s177, %s180
    %p189 = scmp.eq.s32.totalorder %s20, 1
    %p190 = por %p188, %p189
    %p191 = scmp.ne.s32.totalorder %s180, %s181
    %p192 = scmp.eq.s32.totalorder %s20, 0
    %p193 = por %p191, %p192
    %p194 = scmp.ne.s32.totalorder %s180, %s181
    %p195 = scmp.eq.s32.totalorder %s21, 1
    %p196 = por %p194, %p195
    %p198 = scmp.ne.s32.totalorder %s181, %s197
    %p199 = scmp.eq.s32.totalorder %s21, 0
    %p200 = por %p198, %p199
    %s201 = ssub.s32 %s15, %s22
    %p202 = scmp.eq.s32.totalorder %s201, 0
    %s204 = sadd.s32 %s203, 1
    %s205 = scalar_select %p202, %s203, %s204
    %p208 = pneg %p202
    %p209 = scmp.eq.s32.totalorder %s15, 1
    %p210 = por %p208, %p209
    %p211 = scmp.ne.s32.totalorder %s203, %s206
    %p212 = scmp.eq.s32.totalorder %s15, 0
    %p213 = por %p211, %p212
    %p214 = scmp.ne.s32.totalorder %s203, %s206
    %p215 = scmp.eq.s32.totalorder %s20, 1
    %p216 = por %p214, %p215
    %p217 = scmp.ne.s32.totalorder %s206, %s207
    %p218 = scmp.eq.s32.totalorder %s20, 0
    %p219 = por %p217, %p218
    %p220 = scmp.ne.s32.totalorder %s206, %s207
    %p221 = scmp.eq.s32.totalorder %s21, 1
    %p222 = por %p220, %p221
    %p224 = scmp.ne.s32.totalorder %s207, %s223
    %p225 = scmp.eq.s32.totalorder %s21, 0
    %p226 = por %p224, %p225
    %p227 = scmp.le.s32.totalorder 1, %s15
    %p228 = scmp.lt.s32.totalorder %s15, 3
    %p229 = pnand %p227, %p228
    %p230 = pneg %p229
    // Predicated region
    $region9: #{tpu_custom_call.1} parent=5 // pred_check
      _
    $region10: #{tpu_custom_call.1} parent=5 // pred_check_branch
      %232 = sbr.rel (%p229) target = $region12
    $region11: #{tpu_custom_call.1} parent=5 // pred_region
      %s233 = ssub.s32 %s15, 1
      // Predicated region
      $region13: #{tpu_custom_call.1} parent=11 // pred_check
        %p234 = pneg %p62
      $region14: #{tpu_custom_call.1} parent=11 // pred_check_branch
        %236 = sbr.rel (%p234) target = $region16
      $region15: #{tpu_custom_call.1} parent=11 // pred_region
        _
      $region16: #{tpu_custom_call.1} parent=11 // pred_fallthru
        _
      // Predicated region
      $region17: #{tpu_custom_call.1} parent=11 // pred_check
        %p237 = pneg %p83
      $region18: #{tpu_custom_call.1} parent=11 // pred_check_branch
        %239 = sbr.rel (%p237) target = $region20
      $region19: #{tpu_custom_call.1} parent=11 // pred_region
        _
      $region20: #{tpu_custom_call.1} parent=11 // pred_fallthru
        _
      // Predicated region
      $region21: #{tpu_custom_call.1} parent=11 // pred_check
        %p240 = pneg %p104
      $region22: #{tpu_custom_call.1} parent=11 // pred_check_branch
        %242 = sbr.rel (%p240) target = $region24
      $region23: #{tpu_custom_call.1} parent=11 // pred_region
        _
      $region24: #{tpu_custom_call.1} parent=11 // pred_fallthru
        _
      // Predicated region
      $region25: #{tpu_custom_call.1} parent=11 // pred_check
        %p243 = pneg %p125
      $region26: #{tpu_custom_call.1} parent=11 // pred_check_branch
        %245 = sbr.rel (%p243) target = $region28
      $region27: #{tpu_custom_call.1} parent=11 // pred_region
        _
      $region28: #{tpu_custom_call.1} parent=11 // pred_fallthru
        _
      // Predicated region
      $region29: #{tpu_custom_call.1} parent=11 // pred_check
        %p246 = pneg %p146
      $region30: #{tpu_custom_call.1} parent=11 // pred_check_branch
        %248 = sbr.rel (%p246) target = $region32
      $region31: #{tpu_custom_call.1} parent=11 // pred_region
        _
      $region32: #{tpu_custom_call.1} parent=11 // pred_fallthru
        _
      // Predicated region
      $region33: #{tpu_custom_call.1} parent=11 // pred_check
        %p249 = pneg %p167
      $region34: #{tpu_custom_call.1} parent=11 // pred_check_branch
        %251 = sbr.rel (%p249) target = $region36
      $region35: #{tpu_custom_call.1} parent=11 // pred_region
        _
      $region36: #{tpu_custom_call.1} parent=11 // pred_fallthru
        _
    $region12: #{tpu_custom_call.1} parent=5 // pred_fallthru
      _
    %p252 = scmp.lt.s32.totalorder %s15, 2
    // Predicated region
    $region37: #{tpu_custom_call.1} parent=5 // pred_check
      %p253 = pneg %p252
    $region38: #{tpu_custom_call.1} parent=5 // pred_check_branch
      %255 = sbr.rel (%p253) target = $region40
    $region39: #{tpu_custom_call.1} parent=5 // pred_region
      // Predicated region
      $region41: #{tpu_custom_call.1} parent=39 // pred_check
        %p256 = pneg %p35
      $region42: #{tpu_custom_call.1} parent=39 // pred_check_branch
        %258 = sbr.rel (%p256) target = $region44
      $region43: #{tpu_custom_call.1} parent=39 // pred_region
        %s259 = smul.u32 2, %s15
        %p260 = scmp.lt.s32.totalorder %s259, 3
        %s261 = scalar_select %p260, %s259, 3
        %s262 = smul.addr %s261, 8
        %s263 = scalar_lea.vmem %s0, %s262
        %s264 = smul.u32 2, %s15
      $region44: #{tpu_custom_call.1} parent=39 // pred_fallthru
        _
    $region40: #{tpu_custom_call.1} parent=5 // pred_fallthru
      _
    %p265 = scmp.le.s32.totalorder 1, %s15
    %p266 = scmp.lt.s32.totalorder %s15, 3
    %p267 = pnand %p265, %p266
    %p268 = pneg %p267
    // Predicated region
    $region45: #{tpu_custom_call.1} parent=5 // pred_check
      _
    $region46: #{tpu_custom_call.1} parent=5 // pred_check_branch
      %270 = sbr.rel (%p267) target = $region48
    $region47: #{tpu_custom_call.1} parent=5 // pred_region
      %s271 = ssub.s32 %s15, 1
      %s272 = smul.u32 2, %s20
      %p273 = scmp.lt.s32.totalorder %s272, 3
      %s274 = scalar_select %p273, %s272, 3
      %s275 = smul.addr %s274, 8
      %s276 = scalar_lea.vmem %s0, %s275
      %p277 = pneg %p41
      %p278 = pneg %p38
      %p279 = pneg %p62
      %p280 = pneg %p59
      %p281 = pneg %p83
      %p282 = pneg %p80
      %p283 = pneg %p104
      %p284 = pneg %p101
      %p285 = pneg %p125
      %p286 = pneg %p122
      %p287 = pneg %p146
      %p288 = pneg %p143
      %p289 = pneg %p167
      %p290 = pneg %p164
      %p291 = pneg %p193
      %p292 = pneg %p190
      %s293 = smul.u32 2, %s20
      %p294 = scmp.lt.s32.totalorder %s293, 3
      %s295 = scalar_select %p294, %s293, 3
      %s296 = smul.addr %s295, 8
      %s297 = scalar_lea.vmem %s7, %s296
      %p298 = pneg %p219
      %p299 = pneg %p216
      %s300 = smul.u32 2, %s20
      %p301 = scmp.lt.s32.totalorder %s300, 3
      %s302 = scalar_select %p301, %s300, 3
      %s303 = smul.addr %s302, 8
      %s304 = scalar_lea.vmem %s8, %s303
      %s305 = smul.u32 2, %s20
      %p306 = scmp.lt.s32.totalorder %s305, 3
      %s307 = scalar_select %p306, %s305, 3
      %s308 = smul.addr %s307, 8
      %s309 = scalar_lea.vmem %s0, %s308
      %s310 = smul.u32 2, %s20
      %s311 = smul.u32 2, %s20
      %p312 = scmp.lt.s32.totalorder %s311, 3
      %s313 = scalar_select %p312, %s311, 3
      %s314 = smul.addr %s313, 8
      %s315 = scalar_lea.vmem %s7, %s314
      %s316 = smul.u32 2, %s20
      %s317 = smul.u32 2, %s20
      %p318 = scmp.lt.s32.totalorder %s317, 3
      %s319 = scalar_select %p318, %s317, 3
      %s320 = smul.addr %s319, 8
      %s321 = scalar_lea.vmem %s8, %s320
      %s322 = smul.u32 2, %s20
      %v323 = vld [vmem:[%s309] sm:$0xff]
      %v324 = vld [vmem:[%s309 + $0x8] sm:$0xff]
      %v325 = vld [vmem:[%s1] sm:$0xff]
      %v326 = vld [vmem:[%s2] sm:$0x1]
      %v328 = vlaneseq
      %v329 = vshrl.u32 %v328, 7
      %v330 = vsub.s32 0, %v329
      %v331 = vrot.slane %v326, %v330
      %vm333 = vcmask 64512
      %v335 = vsel %vm333, %v323, 0
      %v338 = vsel %vm333, %v324, 0
      %340 = vmatprep.subr.mxu0 0.0
      %341 = vmatpush1.msra.mxu0 %v325
      %342 = vmatprep.subr.mxu0 0.0
      %343 = vmatpush1.msra.mxu0 0.0
      %344 = vmatprep.subr.mxu0 0.0
      %345 = vmatpush1.msra.mxu0 0.0
      %346 = vmatprep.subr.mxu0 0.0
      %347 = vmatpush1.msra.mxu0 0.0
      %348 = vmatprep.subr.mxu0 0.0
      %349 = vmatpush1.msra.mxu0 0.0
      %350 = vmatprep.subr.mxu0 0.0
      %351 = vmatpush1.msra.mxu0 0.0
      %352 = vmatprep.subr.mxu0 0.0
      %353 = vmatpush1.msra.mxu0 0.0
      %354 = vmatprep.subr.mxu0 0.0
      %355 = vmatpush1.msra.mxu0 0.0
      %356 = vmatprep.subr.mxu0 0.0
      %357 = vmatpush1.msra.mxu0 0.0
      %358 = vmatprep.subr.mxu0 0.0
      %359 = vmatpush1.msra.mxu0 0.0
      %360 = vmatprep.subr.mxu0 0.0
      %361 = vmatpush1.msra.mxu0 0.0
      %362 = vmatprep.subr.mxu0 0.0
      %363 = vmatpush1.msra.mxu0 0.0
      %364 = vmatprep.subr.mxu0 0.0
      %365 = vmatpush1.msra.mxu0 0.0
      %366 = vmatprep.subr.mxu0 0.0
      %367 = vmatpush1.msra.mxu0 0.0
      %368 = vmatprep.subr.mxu0 0.0
      %369 = vmatpush1.msra.mxu0 0.0
      %370 = vmatprep.subr.mxu0 0.0
      %371 = vmatpush1.msra.mxu0 0.0
      %372 = vmatprep.subr.mxu0 0.0
      %373 = vmatpush1.msra.mxu0 0.0
      %374 = vmatprep.subr.mxu0 0.0
      %375 = vmatpush1.msra.mxu0 0.0
      %376 = vmatprep.subr.mxu0 0.0
      %377 = vmatpush1.msra.mxu0 0.0
      %378 = vmatprep.subr.mxu0 0.0
      %379 = vmatpush1.msra.mxu0 0.0
      %380 = vmatprep.subr.mxu0 0.0
      %381 = vmatpush1.msra.mxu0 0.0
      %382 = vmatprep.subr.mxu0 0.0
      %383 = vmatpush1.msra.mxu0 0.0
      %384 = vmatprep.subr.mxu0 0.0
      %385 = vmatpush1.msra.mxu0 0.0
      %386 = vmatprep.subr.mxu0 0.0
      %387 = vmatpush1.msra.mxu0 0.0
      %388 = vmatprep.subr.mxu0 0.0
      %389 = vmatpush1.msra.mxu0 0.0
      %390 = vmatprep.subr.mxu0 0.0
      %391 = vmatpush1.msra.mxu0 0.0
      %392 = vmatprep.subr.mxu0 0.0
      %393 = vmatpush1.msra.mxu0 0.0
      %394 = vmatprep.subr.mxu0 0.0
      %395 = vmatpush1.msra.mxu0 0.0
      %396 = vmatprep.subr.mxu0 0.0
      %397 = vmatpush1.msra.mxu0 0.0
      %398 = vmatprep.subr.mxu0 0.0
      %399 = vmatpush1.msra.mxu0 0.0
      %400 = vmatprep.subr.mxu0 0.0
      %401 = vmatpush1.msra.mxu0 0.0
      %402 = vmatprep.subr.mxu0 0.0
      %403 = vmatpush1.msra.mxu0 0.0
      %404 = vmatprep.mubr.f32.mxu0 0.0
      %405 = vmatmul.mubr.f32.gmra.mrb[0].mxu0 %v335
      %v406 = vpop.f32.mrb[0].mxu0
      %v407 = vadd.f32 %v331, %v406
      %v408 = vpop.f32.mrb[0].mxu0
      %409 = vmatprep.mubr.f32.mxu0 0.0
      %410 = vmatmul.mubr.f32.gmra.mrb[0].mxu0 %v338
      %v411 = vpop.f32.mrb[0].mxu0
      %v412 = vadd.f32 %v331, %v411
      %v413 = vpop.f32.mrb[0].mxu0
      %414 = vdwg.mxu0
      %v415 = vtanh.pop %v407
      %v416 = vtanh.pop %v412
      %v417 = vld [vmem:[%s3] sm:$0xff]
      %v418 = vld [vmem:[%s3 + $0x8] sm:$0xff]
      %v419 = vld [vmem:[%s3 + $0x10] sm:$0xff]
      %v420 = vld [vmem:[%s3 + $0x18] sm:$0xff]
      %v421 = vld [vmem:[%s4] sm:$0x1]
      %v423 = vlaneseq
      %v424 = vshrl.u32 %v423, 7
      %v425 = vsub.s32 0, %v424
      %v426 = vrot.slane %v421, %v425
      %vm428 = vcmask 261120
      %v430 = vsel %vm428, %v415, 0
      %v433 = vsel %vm428, %v416, 0
      %435 = vmatprep.subr.mxu0 0.0
      %436 = vmatpush1.msra.mxu0 %v417
      %437 = vmatprep.subr.mxu0 0.0
      %438 = vmatpush1.msra.mxu0 %v418
      %439 = vmatprep.subr.mxu0 0.0
      %440 = vmatpush1.msra.mxu0 %v419
      %441 = vmatprep.subr.mxu0 0.0
      %442 = vmatpush1.msra.mxu0 %v420
      %443 = vmatprep.subr.mxu0 0.0
      %444 = vmatpush1.msra.mxu0 0.0
      %445 = vmatprep.subr.mxu0 0.0
      %446 = vmatpush1.msra.mxu0 0.0
      %447 = vmatprep.subr.mxu0 0.0
      %448 = vmatpush1.msra.mxu0 0.0
      %449 = vmatprep.subr.mxu0 0.0
      %450 = vmatpush1.msra.mxu0 0.0
      %451 = vmatprep.subr.mxu0 0.0
      %452 = vmatpush1.msra.mxu0 0.0
      %453 = vmatprep.subr.mxu0 0.0
      %454 = vmatpush1.msra.mxu0 0.0
      %455 = vmatprep.subr.mxu0 0.0
      %456 = vmatpush1.msra.mxu0 0.0
      %457 = vmatprep.subr.mxu0 0.0
      %458 = vmatpush1.msra.mxu0 0.0
      %459 = vmatprep.subr.mxu0 0.0
      %460 = vmatpush1.msra.mxu0 0.0
      %461 = vmatprep.subr.mxu0 0.0
      %462 = vmatpush1.msra.mxu0 0.0
      %463 = vmatprep.subr.mxu0 0.0
      %464 = vmatpush1.msra.mxu0 0.0
      %465 = vmatprep.subr.mxu0 0.0
      %466 = vmatpush1.msra.mxu0 0.0
      %467 = vmatprep.subr.mxu0 0.0
      %468 = vmatpush1.msra.mxu0 0.0
      %469 = vmatprep.subr.mxu0 0.0
      %470 = vmatpush1.msra.mxu0 0.0
      %471 = vmatprep.subr.mxu0 0.0
      %472 = vmatpush1.msra.mxu0 0.0
      %473 = vmatprep.subr.mxu0 0.0
      %474 = vmatpush1.msra.mxu0 0.0
      %475 = vmatprep.subr.mxu0 0.0
      %476 = vmatpush1.msra.mxu0 0.0
      %477 = vmatprep.subr.mxu0 0.0
      %478 = vmatpush1.msra.mxu0 0.0
      %479 = vmatprep.subr.mxu0 0.0
      %480 = vmatpush1.msra.mxu0 0.0
      %481 = vmatprep.subr.mxu0 0.0
      %482 = vmatpush1.msra.mxu0 0.0
      %483 = vmatprep.subr.mxu0 0.0
      %484 = vmatpush1.msra.mxu0 0.0
      %485 = vmatprep.subr.mxu0 0.0
      %486 = vmatpush1.msra.mxu0 0.0
      %487 = vmatprep.subr.mxu0 0.0
      %488 = vmatpush1.msra.mxu0 0.0
      %489 = vmatprep.subr.mxu0 0.0
      %490 = vmatpush1.msra.mxu0 0.0
      %491 = vmatprep.subr.mxu0 0.0
      %492 = vmatpush1.msra.mxu0 0.0
      %493 = vmatprep.subr.mxu0 0.0
      %494 = vmatpush1.msra.mxu0 0.0
      %495 = vmatprep.subr.mxu0 0.0
      %496 = vmatpush1.msra.mxu0 0.0
      %497 = vmatprep.subr.mxu0 0.0
      %498 = vmatpush1.msra.mxu0 0.0
      %499 = vmatprep.mubr.f32.mxu0 0.0
      %500 = vmatmul.mubr.f32.gmra.mrb[0].mxu0 %v430
      %v501 = vpop.f32.mrb[0].mxu0
      %v502 = vadd.f32 %v426, %v501
      %v503 = vpop.f32.mrb[0].mxu0
      %504 = vmatprep.mubr.f32.mxu0 0.0
      %505 = vmatmul.mubr.f32.gmra.mrb[0].mxu0 %v433
      %v506 = vpop.f32.mrb[0].mxu0
      %v507 = vadd.f32 %v426, %v506
      %v508 = vpop.f32.mrb[0].mxu0
      %509 = vdwg.mxu0
      %v510 = vtanh.pop %v502
      %v511 = vtanh.pop %v507
      %v512 = vld [vmem:[%s5] sm:$0xff]
      %v513 = vld [vmem:[%s5 + $0x8] sm:$0xff]
      %v514 = vld [vmem:[%s5 + $0x10] sm:$0xff]
      %v515 = vld [vmem:[%s5 + $0x18] sm:$0xff]
      %v516 = vld [vmem:[%s6] sm:$0x1]
      %v518 = vlaneseq
      %v519 = vshrl.u32 %v518, 7
      %v520 = vsub.s32 0, %v519
      %v521 = vrot.slane %v516, %v520
      %523 = vmatprep.subr.mxu0 0.0
      %524 = vmatpush1.msra.mxu0 %v512
      %525 = vmatprep.subr.mxu0 0.0
      %526 = vmatpush1.msra.mxu0 %v513
      %527 = vmatprep.subr.mxu0 0.0
      %528 = vmatpush1.msra.mxu0 %v514
      %529 = vmatprep.subr.mxu0 0.0
      %530 = vmatpush1.msra.mxu0 %v515
      %531 = vmatprep.subr.mxu0 0.0
      %532 = vmatpush1.msra.mxu0 0.0
      %533 = vmatprep.subr.mxu0 0.0
      %534 = vmatpush1.msra.mxu0 0.0
      %535 = vmatprep.subr.mxu0 0.0
      %536 = vmatpush1.msra.mxu0 0.0
      %537 = vmatprep.subr.mxu0 0.0
      %538 = vmatpush1.msra.mxu0 0.0
      %539 = vmatprep.subr.mxu0 0.0
      %540 = vmatpush1.msra.mxu0 0.0
      %541 = vmatprep.subr.mxu0 0.0
      %542 = vmatpush1.msra.mxu0 0.0
      %543 = vmatprep.subr.mxu0 0.0
      %544 = vmatpush1.msra.mxu0 0.0
      %545 = vmatprep.subr.mxu0 0.0
      %546 = vmatpush1.msra.mxu0 0.0
      %547 = vmatprep.subr.mxu0 0.0
      %548 = vmatpush1.msra.mxu0 0.0
      %549 = vmatprep.subr.mxu0 0.0
      %550 = vmatpush1.msra.mxu0 0.0
      %551 = vmatprep.subr.mxu0 0.0
      %552 = vmatpush1.msra.mxu0 0.0
      %553 = vmatprep.subr.mxu0 0.0
      %554 = vmatpush1.msra.mxu0 0.0
      %555 = vmatprep.subr.mxu0 0.0
      %556 = vmatpush1.msra.mxu0 0.0
      %557 = vmatprep.subr.mxu0 0.0
      %558 = vmatpush1.msra.mxu0 0.0
      %559 = vmatprep.subr.mxu0 0.0
      %560 = vmatpush1.msra.mxu0 0.0
      %561 = vmatprep.subr.mxu0 0.0
      %562 = vmatpush1.msra.mxu0 0.0
      %563 = vmatprep.subr.mxu0 0.0
      %564 = vmatpush1.msra.mxu0 0.0
      %565 = vmatprep.subr.mxu0 0.0
      %566 = vmatpush1.msra.mxu0 0.0
      %567 = vmatprep.subr.mxu0 0.0
      %568 = vmatpush1.msra.mxu0 0.0
      %569 = vmatprep.subr.mxu0 0.0
      %570 = vmatpush1.msra.mxu0 0.0
      %571 = vmatprep.subr.mxu0 0.0
      %572 = vmatpush1.msra.mxu0 0.0
      %573 = vmatprep.subr.mxu0 0.0
      %574 = vmatpush1.msra.mxu0 0.0
      %575 = vmatprep.subr.mxu0 0.0
      %576 = vmatpush1.msra.mxu0 0.0
      %577 = vmatprep.subr.mxu0 0.0
      %578 = vmatpush1.msra.mxu0 0.0
      %579 = vmatprep.subr.mxu0 0.0
      %580 = vmatpush1.msra.mxu0 0.0
      %581 = vmatprep.subr.mxu0 0.0
      %582 = vmatpush1.msra.mxu0 0.0
      %583 = vmatprep.subr.mxu0 0.0
      %584 = vmatpush1.msra.mxu0 0.0
      %585 = vmatprep.subr.mxu0 0.0
      %586 = vmatpush1.msra.mxu0 0.0
      %587 = vmatprep.mubr.f32.mxu0 0.0
      %588 = vmatmul.mubr.f32.gmra.mrb[0].mxu0 %v430
      %v589 = vpop.f32.mrb[0].mxu0
      %v590 = vadd.f32 %v521, %v589
      %v591 = vpop.f32.mrb[0].mxu0
      %592 = vmatprep.mubr.f32.mxu0 0.0
      %593 = vmatmul.mubr.f32.gmra.mrb[0].mxu0 %v433
      %v594 = vpop.f32.mrb[0].mxu0
      %v595 = vadd.f32 %v521, %v594
      %v596 = vpop.f32.mrb[0].mxu0
      %597 = vdwg.mxu0
      %v598 = vmul.f32 %v510, 1.442695
      %v599 = vpow.pop %v598
      %v600 = vmul.f32 %v511, 1.442695
      %v601 = vpow.pop %v600
      %604 = vrot.lane.b32.xlu0 %v599, 8
      %v605 = vpop.permute.xlu0 %604
      %606 = vrot.lane.b32.xlu0 %v601, 8
      %v607 = vpop.permute.xlu0 %606
      %v610 = vmul.f32 %v323, %v605
      %v611 = vmul.f32 %v324, %v607
      %614 = vrot.lane.b32.xlu0 %v590, 8
      %v615 = vpop.permute.xlu0 %614
      %616 = vrot.lane.b32.xlu0 %v595, 8
      %v617 = vpop.permute.xlu0 %616
      %v620 = vadd.f32 %v610, %v615
      %v621 = vadd.f32 %v611, %v617
      %v622 = vsel %vm333, %v323, %v620
      %v623 = vsel %vm333, %v324, %v621
      %vm624 = vcmask 130048
      %625 = vst.msk [vmem:[%s315] sm:$0xff] %vm624, %v622
      %626 = vst.msk [vmem:[%s315 + $0x8] sm:$0xff] %vm624, %v623
      %v627 = vsel %vm333, %v510, 0.0
      %628 = vadd.xlane.f32.xlu0 %v627
      %v629 = vpop.xlane.xlu0 %628
      %v630 = vsel %vm333, %v511, 0.0
      %631 = vadd.xlane.f32.xlu0 %v630
      %v632 = vpop.xlane.xlu0 %631
      %vm633 = vcmask 7168
      %634 = vst.msk [vmem:[%s321] sm:$0xff] %vm633, %v629
      %635 = vst.msk [vmem:[%s321 + $0x8] sm:$0xff] %vm633, %v632
      %s636 = smul.u32 2, %s20
      %p637 = scmp.lt.s32.totalorder %s636, 3
      %s638 = scalar_select %p637, %s636, 3
      %s639 = smul.addr %s638, 8
      %s640 = scalar_lea.vmem %s7, %s639
      %s641 = smul.u32 2, %s20
      %p642 = scmp.lt.s32.totalorder %s641, 3
      %s643 = scalar_select %p642, %s641, 3
      %s644 = smul.addr %s643, 8
      %s645 = scalar_lea.vmem %s8, %s644
      // Predicated region
      $region49: #{tpu_custom_call.1} parent=47 // pred_check
        %p646 = pneg %p190
      $region50: #{tpu_custom_call.1} parent=47 // pred_check_branch
        %648 = sbr.rel (%p646) target = $region52
      $region51: #{tpu_custom_call.1} parent=47 // pred_region
        %s649 = smul.u32 2, %s20
      $region52: #{tpu_custom_call.1} parent=47 // pred_fallthru
        _
      // Predicated region
      $region53: #{tpu_custom_call.1} parent=47 // pred_check
        %p650 = pneg %p216
      $region54: #{tpu_custom_call.1} parent=47 // pred_check_branch
        %652 = sbr.rel (%p650) target = $region56
      $region55: #{tpu_custom_call.1} parent=47 // pred_region
        %s653 = smul.u32 2, %s20
      $region56: #{tpu_custom_call.1} parent=47 // pred_fallthru
        _
    $region48: #{tpu_custom_call.1} parent=5 // pred_fallthru
      _
    %p654 = scmp.le.s32.totalorder 2, %s15
    // Predicated region
    $region57: #{tpu_custom_call.1} parent=5 // pred_check
      %p655 = pneg %p654
    $region58: #{tpu_custom_call.1} parent=5 // pred_check_branch
      %657 = sbr.rel (%p655) target = $region60
    $region59: #{tpu_custom_call.1} parent=5 // pred_region
      %s658 = ssub.s32 %s15, 2
      // Predicated region
      $region61: #{tpu_custom_call.1} parent=59 // pred_check
        %p659 = pneg %p196
      $region62: #{tpu_custom_call.1} parent=59 // pred_check_branch
        %661 = sbr.rel (%p659) target = $region64
      $region63: #{tpu_custom_call.1} parent=59 // pred_region
        %s662 = smul.u32 2, %s21
        %p663 = scmp.lt.s32.totalorder %s662, 3
        %s664 = scalar_select %p663, %s662, 3
        %s665 = smul.addr %s664, 8
        %s666 = scalar_lea.vmem %s7, %s665
      $region64: #{tpu_custom_call.1} parent=59 // pred_fallthru
        _
      // Predicated region
      $region65: #{tpu_custom_call.1} parent=59 // pred_check
        %p667 = pneg %p222
      $region66: #{tpu_custom_call.1} parent=59 // pred_check_branch
        %669 = sbr.rel (%p667) target = $region68
      $region67: #{tpu_custom_call.1} parent=59 // pred_region
        %s670 = smul.u32 2, %s21
        %p671 = scmp.lt.s32.totalorder %s670, 3
        %s672 = scalar_select %p671, %s670, 3
        %s673 = smul.addr %s672, 8
        %s674 = scalar_lea.vmem %s8, %s673
      $region68: #{tpu_custom_call.1} parent=59 // pred_fallthru
        _
    $region60: #{tpu_custom_call.1} parent=5 // pred_fallthru
      _
  $region6: #{tpu_custom_call.1} parent=0 // loop_footer
    %s19 = sadd.s32 1, %s15
  $region7: #{tpu_custom_call.1} parent=0 // loop_footer_branch
    %14 = sbr.rel target = $region3
  $region8: #{tpu_custom_call.1} parent=0 // loop_exit
    _

</llo_original>
